<compile_context>
chip_gen: v7x
topology: tpu7x:2x2x1
jax: 0.10.0
libtpu: 0.0.40
codegen_flags: <defaults>
</compile_context>

<pallas_src>
from functools import partial

import numpy as np
import jax
import jax.numpy as jnp
from jax.experimental import pallas as pl
from jax.experimental.pallas import tpu as pltpu


def _inv_res_kernel(x_ref, col_ref, row_ref, w1_ref, b1_ref, wd_ref, b2_ref,
                    w3_ref, b3_ref, o_ref, *, H, W, stride, leak, is_res):
    """One image per grid step, NCHW-flat (channels = sublanes, H*W = lanes).

    x_ref  : (1, Cin, M)   f32   M = H*W
    col_ref: (1, M)        i32   j (column index of flat position m)
    row_ref: (1, M)        i32   i (row index of flat position m)
    w1_ref : (Cmid, Cin)   bf16  1x1 expand conv, BN1 scale folded in
    b1_ref : (Cmid, 1)     f32   BN1 bias
    wd_ref : (Cmid, 9)     f32   3x3 depthwise taps (kh*3+kw), BN2 folded in
    b2_ref : (Cmid, 1)     f32   BN2 bias
    w3_ref : (Cout, Cmid)  bf16  1x1 project conv, BN3 scale folded in
    b3_ref : (Cout, 1)     f32   BN3 bias
    o_ref  : (1, Cout, Mo)       Mo = Ho*Wo
    """
    M = x_ref.shape[2]
    x = x_ref[0]                                     # (Cin, M) f32
    colj = col_ref[...]                              # (1, M)
    rowi = row_ref[...]                              # (1, M)

    def act(v):
        if leak == 0:
            return jnp.maximum(v, 0.0)
        return jnp.where(v > 0, v, leak * v)

    def lroll(v, k):
        # circular roll along the lane (flattened spatial) axis; positive k
        # moves elements towards higher indices (np.roll convention).
        return pltpu.roll(v, shift=k % M, axis=1)

    # ---- stage 1: 1x1 expand conv (+ folded BN1) + ReLU -- one MXU matmul --
    h1 = jnp.dot(w1_ref[...], x.astype(w1_ref.dtype),
                 preferred_element_type=jnp.float32)          # (Cmid, M)
    h1 = act(h1 + b1_ref[...])

    # ---- stage 2: reflect-pad(1) + 3x3 depthwise conv (+ BN2) + ReLU -------
    # +-1 column neighbours: lane rotations (XLU) + boundary-column selects
    # (reflection at j=0 / j=W-1).  No padded tensor, no misaligned slices.
    wd = wd_ref[...]                                          # (Cmid, 9)
    nxt = lroll(h1, -1)                                       # h1[:, m+1]
    prv = lroll(h1, 1)                                        # h1[:, m-1]
    right = jnp.where(colj == W - 1, prv, nxt)                # h1[:, (i, refl(j+1))]
    left = jnp.where(colj == 0, nxt, prv)                     # h1[:, (i, refl(j-1))]

    def mix(kh):
        # per-row-offset partial sum; the first tap initialises the
        # accumulator (no zeros materialisation).
        return (left * wd[:, 3 * kh + 0:3 * kh + 1]
                + h1 * wd[:, 3 * kh + 1:3 * kh + 2]
                + right * wd[:, 3 * kh + 2:3 * kh + 3])

    r_top, r_mid, r_bot = mix(0), mix(1), mix(2)

    # +-1 row neighbours: lane rotations by +-W + boundary-row selects
    # (reflection at i=0 / i=H-1).
    up = jnp.where(rowi == 0, lroll(r_top, -W), lroll(r_top, W))
    down = jnp.where(rowi == H - 1, lroll(r_bot, W), lroll(r_bot, -W))
    acc = r_mid + up + down                                   # (Cmid, M)

    if stride == 2:
        # TODO(synk): compute only output positions instead of full-res + slice.
        acc = acc.reshape(acc.shape[0], H, W)[:, ::2, ::2]
        acc = acc.reshape(acc.shape[0], -1)
    h2 = act(acc + b2_ref[...])                               # (Cmid, Mo)

    # ---- stage 3: 1x1 project conv (+ folded BN3) (+ residual) -------------
    out = jnp.dot(w3_ref[...], h2.astype(w3_ref.dtype),
                  preferred_element_type=jnp.float32)         # (Cout, Mo)
    out = out + b3_ref[...]
    if is_res:
        out = out + x                       # x is already (Cout, M) NCHW-flat
    o_ref[...] = out[None].astype(o_ref.dtype)


def inverted_residual_forward(x_nchw,
                              w1, g1, be1, m1, v1,
                              wd, g2, be2, m2, v2,
                              w3, g3, be3, m3, v3,
                              *, stride=1, leak=0.0, dilation=1, eps=1e-5,
                              mxu_dtype=jnp.bfloat16):
    """InvertedResidual.forward (eval-mode BatchNorm folded into the convs).

    x_nchw: (N, Cin, H, W)
    w1: (Cmid, Cin, 1, 1)   firstlayer  (1x1 conv, no bias)
    wd: (Cmid, 1, 3, 3)     depthwise   (3x3 conv, groups=Cmid, no bias)
    w3: (Cout, Cmid, 1, 1)  pointwise   (1x1 conv, no bias)
    g*/be*/m*/v*: BatchNorm gamma / beta / running_mean / running_var
    """
    assert stride in (1, 2)
    assert dilation == 1            # TODO(synk): dilation > 1 not implemented
    N, Cin, H, W = x_nchw.shape
    assert H >= 2 and W >= 2, "reflect-pad(1) needs H, W >= 2"
    Cmid = w1.shape[0]
    Cout = w3.shape[0]
    is_res = (stride == 1 and Cin == Cout)
    f32 = jnp.float32

    # ---- fold BatchNorm (running stats) into conv weights / biases ---------
    s1 = (g1 / jnp.sqrt(v1 + eps)).astype(f32)
    w1f = (w1[:, :, 0, 0].astype(f32) * s1[:, None]).astype(mxu_dtype)  # (Cmid, Cin)
    b1f = (be1 - m1 * s1).astype(f32)[:, None]                          # (Cmid, 1)

    s2 = (g2 / jnp.sqrt(v2 + eps)).astype(f32)
    wdf = wd[:, 0].reshape(Cmid, 9).astype(f32) * s2[:, None]           # (Cmid, 9)
    b2f = (be2 - m2 * s2).astype(f32)[:, None]                          # (Cmid, 1)

    s3 = (g3 / jnp.sqrt(v3 + eps)).astype(f32)
    w3f = (w3[:, :, 0, 0].astype(f32) * s3[:, None]).astype(mxu_dtype)  # (Cout, Cmid)
    b3f = (be3 - m3 * s3).astype(f32)[:, None]                          # (Cout, 1)

    Ho = (H + 2 - 3) // stride + 1
    Wo = (W + 2 - 3) // stride + 1
    M = H * W

    # NCHW-flat in/out: reshapes only, no HBM layout transposes.
    x_flat = x_nchw.reshape(N, Cin, M).astype(f32)

    # flat-position -> (row, col) index maps used by the reflect-pad boundary
    # selects in the kernel (tiny, grid-invariant).
    colmap = jnp.tile(jnp.arange(W, dtype=jnp.int32), H)[None, :]       # (1, M)
    rowmap = jnp.repeat(jnp.arange(H, dtype=jnp.int32), W)[None, :]     # (1, M)

    kernel = partial(_inv_res_kernel, H=H, W=W, stride=stride, leak=leak,
                     is_res=is_res)

    out_flat = pl.pallas_call(
        kernel,
        out_shape=jax.ShapeDtypeStruct((N, Cout, Ho * Wo), f32),
        grid=(N,),
        in_specs=[
            pl.BlockSpec((1, Cin, M), lambda n: (n, 0, 0)),
            pl.BlockSpec((1, M), lambda n: (0, 0)),
            pl.BlockSpec((1, M), lambda n: (0, 0)),
            pl.BlockSpec((Cmid, Cin), lambda n: (0, 0)),
            pl.BlockSpec((Cmid, 1), lambda n: (0, 0)),
            pl.BlockSpec((Cmid, 9), lambda n: (0, 0)),
            pl.BlockSpec((Cmid, 1), lambda n: (0, 0)),
            pl.BlockSpec((Cout, Cmid), lambda n: (0, 0)),
            pl.BlockSpec((Cout, 1), lambda n: (0, 0)),
        ],
        out_specs=pl.BlockSpec((1, Cout, Ho * Wo), lambda n: (n, 0, 0)),
        compiler_params=pltpu.CompilerParams(
            dimension_semantics=("parallel",),
            vmem_limit_bytes=32 * 1024 * 1024),
    )(x_flat, colmap, rowmap, w1f, b1f, wdf, b2f, w3f, b3f)

    return out_flat.reshape(N, Cout, Ho, Wo)


def _reference_forward(x, w1, bn1, wd, bn2, w3, bn3, *, stride, leak, eps):
    """Brute-force float64 numpy reference of InvertedResidual.forward."""
    x = np.asarray(x, np.float64)
    w1 = np.asarray(w1, np.float64)
    wd = np.asarray(wd, np.float64)
    w3 = np.asarray(w3, np.float64)
    g1, b1, m1, v1 = [np.asarray(a, np.float64) for a in bn1]
    g2, b2, m2, v2 = [np.asarray(a, np.float64) for a in bn2]
    g3, b3, m3, v3 = [np.asarray(a, np.float64) for a in bn3]

    def bn(y, g, b, m, v):
        return (y - m[None, :, None, None]) / np.sqrt(v[None, :, None, None] + eps) \
            * g[None, :, None, None] + b[None, :, None, None]

    def act(y):
        return np.maximum(y, 0.0) if leak == 0 else np.where(y > 0, y, leak * y)

    h = np.einsum('nchw,mc->nmhw', x, w1[:, :, 0, 0])
    h = act(bn(h, g1, b1, m1, v1))
    hp = np.pad(h, ((0, 0), (0, 0), (1, 1), (1, 1)), mode='reflect')
    Nb, Cm, Hh, Ww = h.shape
    Ho = (Hh + 2 - 3) // stride + 1
    Wo = (Ww + 2 - 3) // stride + 1
    d = np.zeros((Nb, Cm, Ho, Wo), np.float64)
    for kh in range(3):
        for kw in range(3):
            d += hp[:, :, kh:kh + (Ho - 1) * stride + 1:stride,
                    kw:kw + (Wo - 1) * stride + 1:stride] \
                * wd[:, 0, kh, kw][None, :, None, None]
    d = act(bn(d, g2, b2, m2, v2))
    out = np.einsum('nchw,oc->nohw', d, w3[:, :, 0, 0])
    out = bn(out, g3, b3, m3, v3)
    if stride == 1 and x.shape[1] == out.shape[1]:
        out = out + x
    return out.astype(np.float32)


if __name__ == "__main__":
    # InvertedResidual(ins=32, outs=32, expansion=4, stride=1, leak=0) -> residual path
    N, Cin, H, W = 2, 32, 16, 16
    expansion = 4
    Cout = Cin
    Cmid = Cin * expansion          # 128 -> channels fill the sublane axis
    stride, leak, eps = 1, 0.0, 1e-5

    key = jax.random.PRNGKey(0)
    ks = jax.random.split(key, 8)

    x = jax.random.normal(ks[0], (N, Cin, H, W), dtype=jnp.float32)

    w1 = jax.random.normal(ks[1], (Cmid, Cin, 1, 1), dtype=jnp.float32) / np.sqrt(Cin)
    wd = jax.random.normal(ks[2], (Cmid, 1, 3, 3), dtype=jnp.float32) / 3.0
    w3 = jax.random.normal(ks[3], (Cout, Cmid, 1, 1), dtype=jnp.float32) / np.sqrt(Cmid)

    def bn_params(k, C):
        k1, k2, k3, k4 = jax.random.split(k, 4)
        g = jax.random.uniform(k1, (C,), jnp.float32, minval=0.5, maxval=1.5)
        b = 0.1 * jax.random.normal(k2, (C,), jnp.float32)
        m = 0.1 * jax.random.normal(k3, (C,), jnp.float32)
        v = jax.random.uniform(k4, (C,), jnp.float32, minval=0.5, maxval=1.5)
        return g, b, m, v

    g1, be1, m1, v1 = bn_params(ks[4], Cmid)
    g2, be2, m2, v2 = bn_params(ks[5], Cmid)
    g3, be3, m3, v3 = bn_params(ks[6], Cout)

    y = inverted_residual_forward(x,
                                  w1, g1, be1, m1, v1,
                                  wd, g2, be2, m2, v2,
                                  w3, g3, be3, m3, v3,
                                  stride=stride, leak=leak, eps=eps)
    y = jax.block_until_ready(y)

    y_ref = _reference_forward(x, w1, (g1, be1, m1, v1), wd, (g2, be2, m2, v2),
                               w3, (g3, be3, m3, v3),
                               stride=stride, leak=leak, eps=eps)

    assert y.shape == (N, Cout, H, W), y.shape
    # Tolerances sized for bf16 MXU operands (f32 accumulation) in the two
    # 1x1 convolutions; the depthwise / BN / residual math is f32.
    np.testing.assert_allclose(np.asarray(y), y_ref, rtol=5e-2, atol=5e-2)

    print("KERNEL_OK")
</pallas_src>

<mosaic_0001>
module attributes {stable_mosaic.version = 11 : i64} {
  func.func @_inv_res_kernel(%arg0: i32, %arg1: memref<1x32x256xf32, #tpu.memory_space<vmem>>, %arg2: memref<1x256xi32, #tpu.memory_space<vmem>>, %arg3: memref<1x256xi32, #tpu.memory_space<vmem>>, %arg4: memref<128x32xbf16, #tpu.memory_space<vmem>>, %arg5: memref<128x1xf32, #tpu.memory_space<vmem>>, %arg6: memref<128x9xf32, #tpu.memory_space<vmem>>, %arg7: memref<128x1xf32, #tpu.memory_space<vmem>>, %arg8: memref<32x128xbf16, #tpu.memory_space<vmem>>, %arg9: memref<32x1xf32, #tpu.memory_space<vmem>>, %arg10: memref<1x32x256xf32, #tpu.memory_space<vmem>>) attributes {dimension_semantics = [#tpu.dimension_semantics<parallel>], iteration_bounds = array<i64: 2>, scalar_prefetch = 0 : i64, scratch_operands = 0 : i64, tpu.core_type = #tpu.core_type<tc>, window_params = [{transform_indices = @transform_0, window_bounds = array<i64: 1, 32, 256>}, {pipeline_mode = #tpu.pipeline_mode<synchronous>, transform_indices = @transform_1, window_bounds = array<i64: 1, 256>}, {pipeline_mode = #tpu.pipeline_mode<synchronous>, transform_indices = @transform_2, window_bounds = array<i64: 1, 256>}, {pipeline_mode = #tpu.pipeline_mode<synchronous>, transform_indices = @transform_3, window_bounds = array<i64: 128, 32>}, {pipeline_mode = #tpu.pipeline_mode<synchronous>, transform_indices = @transform_4, window_bounds = array<i64: 128, 1>}, {pipeline_mode = #tpu.pipeline_mode<synchronous>, transform_indices = @transform_5, window_bounds = array<i64: 128, 9>}, {pipeline_mode = #tpu.pipeline_mode<synchronous>, transform_indices = @transform_6, window_bounds = array<i64: 128, 1>}, {pipeline_mode = #tpu.pipeline_mode<synchronous>, transform_indices = @transform_7, window_bounds = array<i64: 32, 128>}, {pipeline_mode = #tpu.pipeline_mode<synchronous>, transform_indices = @transform_8, window_bounds = array<i64: 32, 1>}, {transform_indices = @transform_9, window_bounds = array<i64: 1, 32, 256>}]} {
    %c0 = arith.constant 0 : index
    %c0_0 = arith.constant 0 : index
    %c0_1 = arith.constant 0 : index
    %0 = vector.load %arg1[%c0, %c0_0, %c0_1] : memref<1x32x256xf32, #tpu.memory_space<vmem>>, vector<1x32x256xf32>
    %1 = vector.shape_cast %0 : vector<1x32x256xf32> to vector<32x256xf32>
    %c0_2 = arith.constant 0 : index
    %c0_3 = arith.constant 0 : index
    %2 = vector.load %arg2[%c0_2, %c0_3] : memref<1x256xi32, #tpu.memory_space<vmem>>, vector<1x256xi32>
    %c0_4 = arith.constant 0 : index
    %c0_5 = arith.constant 0 : index
    %3 = vector.load %arg3[%c0_4, %c0_5] : memref<1x256xi32, #tpu.memory_space<vmem>>, vector<1x256xi32>
    %c0_6 = arith.constant 0 : index
    %c0_7 = arith.constant 0 : index
    %4 = vector.load %arg4[%c0_6, %c0_7] : memref<128x32xbf16, #tpu.memory_space<vmem>>, vector<128x32xbf16>
    %5 = arith.truncf %1 : vector<32x256xf32> to vector<32x256xbf16>
    %cst = arith.constant dense<0.000000e+00> : vector<128x256xf32>
    %6 = tpu.matmul %4, %5, %cst {dimension_numbers = #tpu.dot_dimension_numbers<[1], [0], [0], [1], [0, 0, 1, 1], [], []>} : vector<128x32xbf16>, vector<32x256xbf16>, vector<128x256xf32> -> vector<128x256xf32>
    %c0_8 = arith.constant 0 : index
    %c0_9 = arith.constant 0 : index
    %7 = vector.load %arg5[%c0_8, %c0_9] : memref<128x1xf32, #tpu.memory_space<vmem>>, vector<128x1xf32>
    %8 = vector.broadcast %7 : vector<128x1xf32> to vector<128x256xf32>
    %9 = arith.addf %6, %8 : vector<128x256xf32>
    %cst_10 = arith.constant 0.000000e+00 : f32
    %10 = vector.broadcast %cst_10 : f32 to vector<128x256xf32>
    %11 = arith.maximumf %9, %10 : vector<128x256xf32>
    %c0_11 = arith.constant 0 : index
    %c0_12 = arith.constant 0 : index
    %12 = vector.load %arg6[%c0_11, %c0_12] : memref<128x9xf32, #tpu.memory_space<vmem>>, vector<128x9xf32>
    %c255_i32 = arith.constant 255 : i32
    %13 = tpu.dynamic_rotate %11 by %c255_i32 dim 1 : vector<128x256xf32>, i32 -> vector<128x256xf32>
    %c1_i32 = arith.constant 1 : i32
    %14 = tpu.dynamic_rotate %11 by %c1_i32 dim 1 : vector<128x256xf32>, i32 -> vector<128x256xf32>
    %c15_i32 = arith.constant 15 : i32
    %15 = vector.broadcast %c15_i32 : i32 to vector<1x256xi32>
    %16 = arith.cmpi eq, %2, %15 : vector<1x256xi32>
    %17 = vector.shape_cast %16 : vector<1x256xi1> to vector<1x256xi1>
    %18 = vector.broadcast %17 : vector<1x256xi1> to vector<128x256xi1>
    %19 = arith.select %18, %14, %13 : vector<128x256xi1>, vector<128x256xf32>
    %c0_i32 = arith.constant 0 : i32
    %20 = vector.broadcast %c0_i32 : i32 to vector<1x256xi32>
    %21 = arith.cmpi eq, %2, %20 : vector<1x256xi32>
    %22 = vector.shape_cast %21 : vector<1x256xi1> to vector<1x256xi1>
    %23 = vector.broadcast %22 : vector<1x256xi1> to vector<128x256xi1>
    %24 = arith.select %23, %13, %14 : vector<128x256xi1>, vector<128x256xf32>
    %25 = vector.extract_strided_slice %12 {offsets = [0, 0], sizes = [128, 1], strides = [1, 1]} : vector<128x9xf32> to vector<128x1xf32>
    %26 = vector.broadcast %25 : vector<128x1xf32> to vector<128x256xf32>
    %27 = arith.mulf %24, %26 : vector<128x256xf32>
    %28 = vector.extract_strided_slice %12 {offsets = [0, 1], sizes = [128, 1], strides = [1, 1]} : vector<128x9xf32> to vector<128x1xf32>
    %29 = vector.broadcast %28 : vector<128x1xf32> to vector<128x256xf32>
    %30 = arith.mulf %11, %29 : vector<128x256xf32>
    %31 = arith.addf %27, %30 : vector<128x256xf32>
    %32 = vector.extract_strided_slice %12 {offsets = [0, 2], sizes = [128, 1], strides = [1, 1]} : vector<128x9xf32> to vector<128x1xf32>
    %33 = vector.broadcast %32 : vector<128x1xf32> to vector<128x256xf32>
    %34 = arith.mulf %19, %33 : vector<128x256xf32>
    %35 = arith.addf %31, %34 : vector<128x256xf32>
    %36 = vector.extract_strided_slice %12 {offsets = [0, 3], sizes = [128, 1], strides = [1, 1]} : vector<128x9xf32> to vector<128x1xf32>
    %37 = vector.broadcast %36 : vector<128x1xf32> to vector<128x256xf32>
    %38 = arith.mulf %24, %37 : vector<128x256xf32>
    %39 = vector.extract_strided_slice %12 {offsets = [0, 4], sizes = [128, 1], strides = [1, 1]} : vector<128x9xf32> to vector<128x1xf32>
    %40 = vector.broadcast %39 : vector<128x1xf32> to vector<128x256xf32>
    %41 = arith.mulf %11, %40 : vector<128x256xf32>
    %42 = arith.addf %38, %41 : vector<128x256xf32>
    %43 = vector.extract_strided_slice %12 {offsets = [0, 5], sizes = [128, 1], strides = [1, 1]} : vector<128x9xf32> to vector<128x1xf32>
    %44 = vector.broadcast %43 : vector<128x1xf32> to vector<128x256xf32>
    %45 = arith.mulf %19, %44 : vector<128x256xf32>
    %46 = arith.addf %42, %45 : vector<128x256xf32>
    %47 = vector.extract_strided_slice %12 {offsets = [0, 6], sizes = [128, 1], strides = [1, 1]} : vector<128x9xf32> to vector<128x1xf32>
    %48 = vector.broadcast %47 : vector<128x1xf32> to vector<128x256xf32>
    %49 = arith.mulf %24, %48 : vector<128x256xf32>
    %50 = vector.extract_strided_slice %12 {offsets = [0, 7], sizes = [128, 1], strides = [1, 1]} : vector<128x9xf32> to vector<128x1xf32>
    %51 = vector.broadcast %50 : vector<128x1xf32> to vector<128x256xf32>
    %52 = arith.mulf %11, %51 : vector<128x256xf32>
    %53 = arith.addf %49, %52 : vector<128x256xf32>
    %54 = vector.extract_strided_slice %12 {offsets = [0, 8], sizes = [128, 1], strides = [1, 1]} : vector<128x9xf32> to vector<128x1xf32>
    %55 = vector.broadcast %54 : vector<128x1xf32> to vector<128x256xf32>
    %56 = arith.mulf %19, %55 : vector<128x256xf32>
    %57 = arith.addf %53, %56 : vector<128x256xf32>
    %c0_i32_13 = arith.constant 0 : i32
    %58 = vector.broadcast %c0_i32_13 : i32 to vector<1x256xi32>
    %59 = arith.cmpi eq, %3, %58 : vector<1x256xi32>
    %c240_i32 = arith.constant 240 : i32
    %60 = tpu.dynamic_rotate %35 by %c240_i32 dim 1 : vector<128x256xf32>, i32 -> vector<128x256xf32>
    %c16_i32 = arith.constant 16 : i32
    %61 = tpu.dynamic_rotate %35 by %c16_i32 dim 1 : vector<128x256xf32>, i32 -> vector<128x256xf32>
    %62 = vector.shape_cast %59 : vector<1x256xi1> to vector<1x256xi1>
    %63 = vector.broadcast %62 : vector<1x256xi1> to vector<128x256xi1>
    %64 = arith.select %63, %60, %61 : vector<128x256xi1>, vector<128x256xf32>
    %c15_i32_14 = arith.constant 15 : i32
    %65 = vector.broadcast %c15_i32_14 : i32 to vector<1x256xi32>
    %66 = arith.cmpi eq, %3, %65 : vector<1x256xi32>
    %c16_i32_15 = arith.constant 16 : i32
    %67 = tpu.dynamic_rotate %57 by %c16_i32_15 dim 1 : vector<128x256xf32>, i32 -> vector<128x256xf32>
    %c240_i32_16 = arith.constant 240 : i32
    %68 = tpu.dynamic_rotate %57 by %c240_i32_16 dim 1 : vector<128x256xf32>, i32 -> vector<128x256xf32>
    %69 = vector.shape_cast %66 : vector<1x256xi1> to vector<1x256xi1>
    %70 = vector.broadcast %69 : vector<1x256xi1> to vector<128x256xi1>
    %71 = arith.select %70, %67, %68 : vector<128x256xi1>, vector<128x256xf32>
    %72 = arith.addf %46, %64 : vector<128x256xf32>
    %73 = arith.addf %72, %71 : vector<128x256xf32>
    %c0_17 = arith.constant 0 : index
    %c0_18 = arith.constant 0 : index
    %74 = vector.load %arg7[%c0_17, %c0_18] : memref<128x1xf32, #tpu.memory_space<vmem>>, vector<128x1xf32>
    %75 = vector.broadcast %74 : vector<128x1xf32> to vector<128x256xf32>
    %76 = arith.addf %73, %75 : vector<128x256xf32>
    %cst_19 = arith.constant 0.000000e+00 : f32
    %77 = vector.broadcast %cst_19 : f32 to vector<128x256xf32>
    %78 = arith.maximumf %76, %77 : vector<128x256xf32>
    %c0_20 = arith.constant 0 : index
    %c0_21 = arith.constant 0 : index
    %79 = vector.load %arg8[%c0_20, %c0_21] : memref<32x128xbf16, #tpu.memory_space<vmem>>, vector<32x128xbf16>
    %80 = arith.truncf %78 : vector<128x256xf32> to vector<128x256xbf16>
    %cst_22 = arith.constant dense<0.000000e+00> : vector<32x256xf32>
    %81 = tpu.matmul %79, %80, %cst_22 {dimension_numbers = #tpu.dot_dimension_numbers<[1], [0], [0], [1], [0, 0, 1, 1], [], []>} : vector<32x128xbf16>, vector<128x256xbf16>, vector<32x256xf32> -> vector<32x256xf32>
    %c0_23 = arith.constant 0 : index
    %c0_24 = arith.constant 0 : index
    %82 = vector.load %arg9[%c0_23, %c0_24] : memref<32x1xf32, #tpu.memory_space<vmem>>, vector<32x1xf32>
    %83 = vector.broadcast %82 : vector<32x1xf32> to vector<32x256xf32>
    %84 = arith.addf %81, %83 : vector<32x256xf32>
    %85 = arith.addf %84, %1 : vector<32x256xf32>
    %86 = vector.shape_cast %85 : vector<32x256xf32> to vector<1x32x256xf32>
    %c0_25 = arith.constant 0 : index
    %c0_26 = arith.constant 0 : index
    %c0_27 = arith.constant 0 : index
    %87 = vector.load %arg10[%c0_25, %c0_26, %c0_27] : memref<1x32x256xf32, #tpu.memory_space<vmem>>, vector<1x32x256xf32>
    tpu.vector_store %arg10[%c0_25, %c0_26, %c0_27], %86 {strides = array<i32>} : memref<1x32x256xf32, #tpu.memory_space<vmem>>, vector<1x32x256xf32>,
    return
  }
  func.func @transform_0(%arg0: i32) -> (i32, i32, i32) {
    %c0_i32 = arith.constant 0 : i32
    %c0_i32_0 = arith.constant 0 : i32
    %c0_i32_1 = arith.constant 0 : i32
    return %arg0, %c0_i32, %c0_i32_0 : i32, i32, i32
  }
  func.func @transform_1(%arg0: i32) -> (i32, i32) {
    %c0_i32 = arith.constant 0 : i32
    %c0_i32_0 = arith.constant 0 : i32
    %c0_i32_1 = arith.constant 0 : i32
    return %c0_i32, %c0_i32_0 : i32, i32
  }
  func.func @transform_2(%arg0: i32) -> (i32, i32) {
    %c0_i32 = arith.constant 0 : i32
    %c0_i32_0 = arith.constant 0 : i32
    %c0_i32_1 = arith.constant 0 : i32
    return %c0_i32, %c0_i32_0 : i32, i32
  }
  func.func @transform_3(%arg0: i32) -> (i32, i32) {
    %c0_i32 = arith.constant 0 : i32
    %c0_i32_0 = arith.constant 0 : i32
    %c0_i32_1 = arith.constant 0 : i32
    return %c0_i32, %c0_i32_0 : i32, i32
  }
  func.func @transform_4(%arg0: i32) -> (i32, i32) {
    %c0_i32 = arith.constant 0 : i32
    %c0_i32_0 = arith.constant 0 : i32
    %c0_i32_1 = arith.constant 0 : i32
    return %c0_i32, %c0_i32_0 : i32, i32
  }
  func.func @transform_5(%arg0: i32) -> (i32, i32) {
    %c0_i32 = arith.constant 0 : i32
    %c0_i32_0 = arith.constant 0 : i32
    %c0_i32_1 = arith.constant 0 : i32
    return %c0_i32, %c0_i32_0 : i32, i32
  }
  func.func @transform_6(%arg0: i32) -> (i32, i32) {
    %c0_i32 = arith.constant 0 : i32
    %c0_i32_0 = arith.constant 0 : i32
    %c0_i32_1 = arith.constant 0 : i32
    return %c0_i32, %c0_i32_0 : i32, i32
  }
  func.func @transform_7(%arg0: i32) -> (i32, i32) {
    %c0_i32 = arith.constant 0 : i32
    %c0_i32_0 = arith.constant 0 : i32
    %c0_i32_1 = arith.constant 0 : i32
    return %c0_i32, %c0_i32_0 : i32, i32
  }
  func.func @transform_8(%arg0: i32) -> (i32, i32) {
    %c0_i32 = arith.constant 0 : i32
    %c0_i32_0 = arith.constant 0 : i32
    %c0_i32_1 = arith.constant 0 : i32
    return %c0_i32, %c0_i32_0 : i32, i32
  }
  func.func @transform_9(%arg0: i32) -> (i32, i32, i32) {
    %c0_i32 = arith.constant 0 : i32
    %c0_i32_0 = arith.constant 0 : i32
    %c0_i32_1 = arith.constant 0 : i32
    return %arg0, %c0_i32, %c0_i32_0 : i32, i32, i32
  }
}

</mosaic_0001>

<llo_original>
// kernel: tpu_custom_call.1
$region0: #{tpu_custom_call.1}
  #allocation0 [shape = 'u32[]', space=smem, size = 0x4, offset = 0x4, fixed_abs, tag = 'smem constant byte address 0x4 - core index']
  #allocation1 [shape = 'u32[144,128]{1,0:T(1,128)}', space=vmem, size = 0x12000, scoped, tag = 'internal scratch']
  %s0 = inlined_call_operand.vmem [shape: f32[2,32,256], index: 0, kind: input, shape index: {}]
  %s1 = inlined_call_operand.vmem [shape: s32[1,256], index: 1, kind: input, shape index: {}]
  %s2 = inlined_call_operand.vmem [shape: s32[1,256], index: 2, kind: input, shape index: {}]
  %s3 = inlined_call_operand.vmem [shape: bf16[128,32], index: 3, kind: input, shape index: {}]
  %s4 = inlined_call_operand.vmem [shape: f32[128,1], index: 4, kind: input, shape index: {}]
  %s5 = inlined_call_operand.vmem [shape: f32[128,9], index: 5, kind: input, shape index: {}]
  %s6 = inlined_call_operand.vmem [shape: f32[128,1], index: 6, kind: input, shape index: {}]
  %s7 = inlined_call_operand.vmem [shape: bf16[32,128], index: 7, kind: input, shape index: {}]
  %s8 = inlined_call_operand.vmem [shape: f32[32,1], index: 8, kind: input, shape index: {}]
  %s9 = inlined_call_operand.hbm [shape: f32[2,32,256], index: 9, kind: output, shape index: {}]
  %s10 = sld [smem:[#allocation0]]
  $region69: #{tpu_custom_call.1} parent=0
    _
  %s12 = ssub.s32 1, %s10
  %s13 = scalar_select 0, %s12, %s10
  $region1: #{tpu_custom_call.1} parent=0
    #allocation2 [shape = 'u8[65536]{0}', space=vmem, size = 0x10000, scoped, tag = 'output window, operand 0']
    #allocation3 [shape = 's32[2]{0}', space=sflag, size = 0x8, scoped, tag = 'scoped memory for tpu_custom_call.1']
    %14 = vsyncpa [#allocation3], 0
    %s15 = scalar_lea.sflag [#allocation3], 1
    %16 = vsyncpa %s15, 0
    loop: start=0, step=1, limit=4
    $region2: #{tpu_custom_call.1} parent=1 // loop_pre_header
      _
    $region3: #{tpu_custom_call.1} parent=1 // loop_header
      %s18 = sphi 0, %s22
      %p19 = scmp.ge.s32.totalorder %s18, 4
      %s28 = sphi 0, %s30
      %s31 = sphi 0, %s28
      %s32 = sphi 0, %s31
      %s48 = sphi 0, %s32
      %s52 = sphi 0, %s52
      %s54 = sphi 0, %s52
      %s55 = sphi 0, %s54
      %s69 = sphi 0, %s55
      %s73 = sphi 0, %s73
      %s75 = sphi 0, %s73
      %s76 = sphi 0, %s75
      %s90 = sphi 0, %s76
      %s94 = sphi 0, %s94
      %s96 = sphi 0, %s94
      %s97 = sphi 0, %s96
      %s111 = sphi 0, %s97
      %s115 = sphi 0, %s115
      %s117 = sphi 0, %s115
      %s118 = sphi 0, %s117
      %s132 = sphi 0, %s118
      %s136 = sphi 0, %s136
      %s138 = sphi 0, %s136
      %s139 = sphi 0, %s138
      %s153 = sphi 0, %s139
      %s157 = sphi 0, %s157
      %s159 = sphi 0, %s157
      %s160 = sphi 0, %s159
      %s174 = sphi 0, %s160
      %s178 = sphi 0, %s178
      %s180 = sphi 0, %s178
      %s181 = sphi 0, %s180
      %s195 = sphi 0, %s181
      %s199 = sphi 0, %s199
      %s201 = sphi 0, %s199
      %s202 = sphi 0, %s201
      %s216 = sphi 0, %s202
      %s222 = sphi 0, %s224
      %s225 = sphi 0, %s222
      %s226 = sphi 0, %s225
      %s242 = sphi 0, %s226
    $region4: #{tpu_custom_call.1} parent=1 // loop_header_branch
      %21 = sbr.rel (%p19) target = $region8
    $region5: #{tpu_custom_call.1} parent=1 // loop_body
      %s23 = ssub.s32 %s18, 1
      %s24 = ssub.s32 %s18, 2
      %s25 = sadd.s32 %s18, 1
      %s26 = ssub.s32 %s18, %s25
      %p27 = scmp.eq.s32.totalorder %s26, 0
      %s29 = sadd.s32 %s28, 1
      %s30 = scalar_select %p27, %s28, %s29
      %p33 = pneg %p27
      %p34 = scmp.eq.s32.totalorder %s18, 1
      %p35 = por %p33, %p34
      %p36 = scmp.ne.s32.totalorder %s28, %s31
      %p37 = scmp.eq.s32.totalorder %s18, 0
      %p38 = por %p36, %p37
      %p39 = scmp.ne.s32.totalorder %s28, %s31
      %p40 = scmp.eq.s32.totalorder %s23, 1
      %p41 = por %p39, %p40
      %p42 = scmp.ne.s32.totalorder %s31, %s32
      %p43 = scmp.eq.s32.totalorder %s23, 0
      %p44 = por %p42, %p43
      %p45 = scmp.ne.s32.totalorder %s31, %s32
      %p46 = scmp.eq.s32.totalorder %s24, 1
      %p47 = por %p45, %p46
      %p49 = scmp.ne.s32.totalorder %s32, %s48
      %p50 = scmp.eq.s32.totalorder %s24, 0
      %p51 = por %p49, %p50
      %s53 = sadd.s32 %s52, 1
      %p56 = scmp.eq.s32.totalorder %s18, 1
      %p57 = scmp.ne.s32.totalorder %s52, %s54
      %p58 = scmp.eq.s32.totalorder %s18, 0
      %p59 = por %p57, %p58
      %p60 = scmp.ne.s32.totalorder %s52, %s54
      %p61 = scmp.eq.s32.totalorder %s23, 1
      %p62 = por %p60, %p61
      %p63 = scmp.ne.s32.totalorder %s54, %s55
      %p64 = scmp.eq.s32.totalorder %s23, 0
      %p65 = por %p63, %p64
      %p66 = scmp.ne.s32.totalorder %s54, %s55
      %p67 = scmp.eq.s32.totalorder %s24, 1
      %p68 = por %p66, %p67
      %p70 = scmp.ne.s32.totalorder %s55, %s69
      %p71 = scmp.eq.s32.totalorder %s24, 0
      %p72 = por %p70, %p71
      %s74 = sadd.s32 %s73, 1
      %p77 = scmp.eq.s32.totalorder %s18, 1
      %p78 = scmp.ne.s32.totalorder %s73, %s75
      %p79 = scmp.eq.s32.totalorder %s18, 0
      %p80 = por %p78, %p79
      %p81 = scmp.ne.s32.totalorder %s73, %s75
      %p82 = scmp.eq.s32.totalorder %s23, 1
      %p83 = por %p81, %p82
      %p84 = scmp.ne.s32.totalorder %s75, %s76
      %p85 = scmp.eq.s32.totalorder %s23, 0
      %p86 = por %p84, %p85
      %p87 = scmp.ne.s32.totalorder %s75, %s76
      %p88 = scmp.eq.s32.totalorder %s24, 1
      %p89 = por %p87, %p88
      %p91 = scmp.ne.s32.totalorder %s76, %s90
      %p92 = scmp.eq.s32.totalorder %s24, 0
      %p93 = por %p91, %p92
      %s95 = sadd.s32 %s94, 1
      %p98 = scmp.eq.s32.totalorder %s18, 1
      %p99 = scmp.ne.s32.totalorder %s94, %s96
      %p100 = scmp.eq.s32.totalorder %s18, 0
      %p101 = por %p99, %p100
      %p102 = scmp.ne.s32.totalorder %s94, %s96
      %p103 = scmp.eq.s32.totalorder %s23, 1
      %p104 = por %p102, %p103
      %p105 = scmp.ne.s32.totalorder %s96, %s97
      %p106 = scmp.eq.s32.totalorder %s23, 0
      %p107 = por %p105, %p106
      %p108 = scmp.ne.s32.totalorder %s96, %s97
      %p109 = scmp.eq.s32.totalorder %s24, 1
      %p110 = por %p108, %p109
      %p112 = scmp.ne.s32.totalorder %s97, %s111
      %p113 = scmp.eq.s32.totalorder %s24, 0
      %p114 = por %p112, %p113
      %s116 = sadd.s32 %s115, 1
      %p119 = scmp.eq.s32.totalorder %s18, 1
      %p120 = scmp.ne.s32.totalorder %s115, %s117
      %p121 = scmp.eq.s32.totalorder %s18, 0
      %p122 = por %p120, %p121
      %p123 = scmp.ne.s32.totalorder %s115, %s117
      %p124 = scmp.eq.s32.totalorder %s23, 1
      %p125 = por %p123, %p124
      %p126 = scmp.ne.s32.totalorder %s117, %s118
      %p127 = scmp.eq.s32.totalorder %s23, 0
      %p128 = por %p126, %p127
      %p129 = scmp.ne.s32.totalorder %s117, %s118
      %p130 = scmp.eq.s32.totalorder %s24, 1
      %p131 = por %p129, %p130
      %p133 = scmp.ne.s32.totalorder %s118, %s132
      %p134 = scmp.eq.s32.totalorder %s24, 0
      %p135 = por %p133, %p134
      %s137 = sadd.s32 %s136, 1
      %p140 = scmp.eq.s32.totalorder %s18, 1
      %p141 = scmp.ne.s32.totalorder %s136, %s138
      %p142 = scmp.eq.s32.totalorder %s18, 0
      %p143 = por %p141, %p142
      %p144 = scmp.ne.s32.totalorder %s136, %s138
      %p145 = scmp.eq.s32.totalorder %s23, 1
      %p146 = por %p144, %p145
      %p147 = scmp.ne.s32.totalorder %s138, %s139
      %p148 = scmp.eq.s32.totalorder %s23, 0
      %p149 = por %p147, %p148
      %p150 = scmp.ne.s32.totalorder %s138, %s139
      %p151 = scmp.eq.s32.totalorder %s24, 1
      %p152 = por %p150, %p151
      %p154 = scmp.ne.s32.totalorder %s139, %s153
      %p155 = scmp.eq.s32.totalorder %s24, 0
      %p156 = por %p154, %p155
      %s158 = sadd.s32 %s157, 1
      %p161 = scmp.eq.s32.totalorder %s18, 1
      %p162 = scmp.ne.s32.totalorder %s157, %s159
      %p163 = scmp.eq.s32.totalorder %s18, 0
      %p164 = por %p162, %p163
      %p165 = scmp.ne.s32.totalorder %s157, %s159
      %p166 = scmp.eq.s32.totalorder %s23, 1
      %p167 = por %p165, %p166
      %p168 = scmp.ne.s32.totalorder %s159, %s160
      %p169 = scmp.eq.s32.totalorder %s23, 0
      %p170 = por %p168, %p169
      %p171 = scmp.ne.s32.totalorder %s159, %s160
      %p172 = scmp.eq.s32.totalorder %s24, 1
      %p173 = por %p171, %p172
      %p175 = scmp.ne.s32.totalorder %s160, %s174
      %p176 = scmp.eq.s32.totalorder %s24, 0
      %p177 = por %p175, %p176
      %s179 = sadd.s32 %s178, 1
      %p182 = scmp.eq.s32.totalorder %s18, 1
      %p183 = scmp.ne.s32.totalorder %s178, %s180
      %p184 = scmp.eq.s32.totalorder %s18, 0
      %p185 = por %p183, %p184
      %p186 = scmp.ne.s32.totalorder %s178, %s180
      %p187 = scmp.eq.s32.totalorder %s23, 1
      %p188 = por %p186, %p187
      %p189 = scmp.ne.s32.totalorder %s180, %s181
      %p190 = scmp.eq.s32.totalorder %s23, 0
      %p191 = por %p189, %p190
      %p192 = scmp.ne.s32.totalorder %s180, %s181
      %p193 = scmp.eq.s32.totalorder %s24, 1
      %p194 = por %p192, %p193
      %p196 = scmp.ne.s32.totalorder %s181, %s195
      %p197 = scmp.eq.s32.totalorder %s24, 0
      %p198 = por %p196, %p197
      %s200 = sadd.s32 %s199, 1
      %p203 = scmp.eq.s32.totalorder %s18, 1
      %p204 = scmp.ne.s32.totalorder %s199, %s201
      %p205 = scmp.eq.s32.totalorder %s18, 0
      %p206 = por %p204, %p205
      %p207 = scmp.ne.s32.totalorder %s199, %s201
      %p208 = scmp.eq.s32.totalorder %s23, 1
      %p209 = por %p207, %p208
      %p210 = scmp.ne.s32.totalorder %s201, %s202
      %p211 = scmp.eq.s32.totalorder %s23, 0
      %p212 = por %p210, %p211
      %p213 = scmp.ne.s32.totalorder %s201, %s202
      %p214 = scmp.eq.s32.totalorder %s24, 1
      %p215 = por %p213, %p214
      %p217 = scmp.ne.s32.totalorder %s202, %s216
      %p218 = scmp.eq.s32.totalorder %s24, 0
      %p219 = por %p217, %p218
      %s220 = ssub.s32 %s18, %s25
      %p221 = scmp.eq.s32.totalorder %s220, 0
      %s223 = sadd.s32 %s222, 1
      %s224 = scalar_select %p221, %s222, %s223
      %p227 = pneg %p221
      %p228 = scmp.eq.s32.totalorder %s18, 1
      %p229 = por %p227, %p228
      %p230 = scmp.ne.s32.totalorder %s222, %s225
      %p231 = scmp.eq.s32.totalorder %s18, 0
      %p232 = por %p230, %p231
      %p233 = scmp.ne.s32.totalorder %s222, %s225
      %p234 = scmp.eq.s32.totalorder %s23, 1
      %p235 = por %p233, %p234
      %p236 = scmp.ne.s32.totalorder %s225, %s226
      %p237 = scmp.eq.s32.totalorder %s23, 0
      %p238 = por %p236, %p237
      %p239 = scmp.ne.s32.totalorder %s225, %s226
      %p240 = scmp.eq.s32.totalorder %s24, 1
      %p241 = por %p239, %p240
      %p243 = scmp.ne.s32.totalorder %s226, %s242
      %p244 = scmp.eq.s32.totalorder %s24, 0
      %p245 = por %p243, %p244
      %p246 = scmp.le.s32.totalorder 1, %s18
      %p247 = scmp.lt.s32.totalorder %s18, 3
      %p248 = pnand %p246, %p247
      %p249 = pneg %p248
      // Predicated region
      $region9: #{tpu_custom_call.1} parent=5 // pred_check
        _
      $region10: #{tpu_custom_call.1} parent=5 // pred_check_branch
        %251 = sbr.rel (%p248) target = $region12
      $region11: #{tpu_custom_call.1} parent=5 // pred_region
        %s252 = ssub.s32 %s18, 1
        // Predicated region
        $region13: #{tpu_custom_call.1} parent=11 // pred_check
          %p253 = pneg %p65
        $region14: #{tpu_custom_call.1} parent=11 // pred_check_branch
          %255 = sbr.rel (%p253) target = $region16
        $region15: #{tpu_custom_call.1} parent=11 // pred_region
          _
        $region16: #{tpu_custom_call.1} parent=11 // pred_fallthru
          _
        // Predicated region
        $region17: #{tpu_custom_call.1} parent=11 // pred_check
          %p256 = pneg %p86
        $region18: #{tpu_custom_call.1} parent=11 // pred_check_branch
          %258 = sbr.rel (%p256) target = $region20
        $region19: #{tpu_custom_call.1} parent=11 // pred_region
          _
        $region20: #{tpu_custom_call.1} parent=11 // pred_fallthru
          _
        // Predicated region
        $region21: #{tpu_custom_call.1} parent=11 // pred_check
          %p259 = pneg %p107
        $region22: #{tpu_custom_call.1} parent=11 // pred_check_branch
          %261 = sbr.rel (%p259) target = $region24
        $region23: #{tpu_custom_call.1} parent=11 // pred_region
          _
        $region24: #{tpu_custom_call.1} parent=11 // pred_fallthru
          _
        // Predicated region
        $region25: #{tpu_custom_call.1} parent=11 // pred_check
          %p262 = pneg %p128
        $region26: #{tpu_custom_call.1} parent=11 // pred_check_branch
          %264 = sbr.rel (%p262) target = $region28
        $region27: #{tpu_custom_call.1} parent=11 // pred_region
          _
        $region28: #{tpu_custom_call.1} parent=11 // pred_fallthru
          _
        // Predicated region
        $region29: #{tpu_custom_call.1} parent=11 // pred_check
          %p265 = pneg %p149
        $region30: #{tpu_custom_call.1} parent=11 // pred_check_branch
          %267 = sbr.rel (%p265) target = $region32
        $region31: #{tpu_custom_call.1} parent=11 // pred_region
          _
        $region32: #{tpu_custom_call.1} parent=11 // pred_fallthru
          _
        // Predicated region
        $region33: #{tpu_custom_call.1} parent=11 // pred_check
          %p268 = pneg %p170
        $region34: #{tpu_custom_call.1} parent=11 // pred_check_branch
          %270 = sbr.rel (%p268) target = $region36
        $region35: #{tpu_custom_call.1} parent=11 // pred_region
          _
        $region36: #{tpu_custom_call.1} parent=11 // pred_fallthru
          _
        // Predicated region
        $region37: #{tpu_custom_call.1} parent=11 // pred_check
          %p271 = pneg %p191
        $region38: #{tpu_custom_call.1} parent=11 // pred_check_branch
          %273 = sbr.rel (%p271) target = $region40
        $region39: #{tpu_custom_call.1} parent=11 // pred_region
          _
        $region40: #{tpu_custom_call.1} parent=11 // pred_fallthru
          _
        // Predicated region
        $region41: #{tpu_custom_call.1} parent=11 // pred_check
          %p274 = pneg %p212
        $region42: #{tpu_custom_call.1} parent=11 // pred_check_branch
          %276 = sbr.rel (%p274) target = $region44
        $region43: #{tpu_custom_call.1} parent=11 // pred_region
          _
        $region44: #{tpu_custom_call.1} parent=11 // pred_fallthru
          _
      $region12: #{tpu_custom_call.1} parent=5 // pred_fallthru
        _
      %p277 = scmp.lt.s32.totalorder %s18, 2
      // Predicated region
      $region45: #{tpu_custom_call.1} parent=5 // pred_check
        %p278 = pneg %p277
      $region46: #{tpu_custom_call.1} parent=5 // pred_check_branch
        %280 = sbr.rel (%p278) target = $region48
      $region47: #{tpu_custom_call.1} parent=5 // pred_region
        // Predicated region
        $region49: #{tpu_custom_call.1} parent=47 // pred_check
          %p281 = pneg %p38
        $region50: #{tpu_custom_call.1} parent=47 // pred_check_branch
          %283 = sbr.rel (%p281) target = $region52
        $region51: #{tpu_custom_call.1} parent=47 // pred_region
          %p284 = scmp.lt.s32.totalorder %s18, 1
          %s285 = scalar_select %p284, %s18, 1
          %s286 = smul.addr %s285, 8
          %s287 = smul.addr %s286, 8
          %s288 = scalar_lea.vmem %s0, %s287
        $region52: #{tpu_custom_call.1} parent=47 // pred_fallthru
          _
      $region48: #{tpu_custom_call.1} parent=5 // pred_fallthru
        _
      %p289 = scmp.le.s32.totalorder 1, %s18
      %p290 = scmp.lt.s32.totalorder %s18, 3
      %p291 = pnand %p289, %p290
      %p292 = pneg %p291
      // Predicated region
      $region53: #{tpu_custom_call.1} parent=5 // pred_check
        _
      $region54: #{tpu_custom_call.1} parent=5 // pred_check_branch
        %294 = sbr.rel (%p291) target = $region56
      $region55: #{tpu_custom_call.1} parent=5 // pred_region
        %s295 = ssub.s32 %s18, 1
        %p296 = scmp.lt.s32.totalorder %s23, 1
        %s297 = scalar_select %p296, %s23, 1
        %s298 = smul.addr %s297, 8
        %s299 = smul.addr %s298, 8
        %s300 = scalar_lea.vmem %s0, %s299
        %p301 = pneg %p44
        %p302 = pneg %p41
        %p303 = pneg %p65
        %p304 = pneg %p62
        %p305 = pneg %p86
        %p306 = pneg %p83
        %p307 = pneg %p107
        %p308 = pneg %p104
        %p309 = pneg %p128
        %p310 = pneg %p125
        %p311 = pneg %p149
        %p312 = pneg %p146
        %p313 = pneg %p170
        %p314 = pneg %p167
        %p315 = pneg %p191
        %p316 = pneg %p188
        %p317 = pneg %p212
        %p318 = pneg %p209
        %p319 = pneg %p238
        %p320 = pneg %p235
        %s321 = sand.u32 %s225, 1
        %s322 = scalar_lea.sflag [#allocation3], %s321
        %s323 = sand.u32 %s225, 1
        %s324 = smul.addr %s323, 64
        %s325 = scalar_lea.vmem [#allocation2], %s324
        %p326 = scmp.lt.s32.totalorder %s23, 1
        %s327 = scalar_select %p326, %s23, 1
        %s328 = smul.addr %s327, 8
        %s329 = smul.addr %s328, 8
        %s330 = scalar_lea.vmem %s0, %s329
        %v332 = vld [vmem:[%s330] sm:$0xff]
        %v333 = vld [vmem:[%s330 + $0x8] sm:$0xff]
        %v334 = vld [vmem:[%s330 + $0x10] sm:$0xff]
        %v335 = vld [vmem:[%s330 + $0x18] sm:$0xff]
        %v336 = vld [vmem:[%s330 + $0x20] sm:$0xff]
        %v337 = vld [vmem:[%s330 + $0x28] sm:$0xff]
        %v338 = vld [vmem:[%s330 + $0x30] sm:$0xff]
        %v339 = vld [vmem:[%s330 + $0x38] sm:$0xff]
        %v340 = vld [vmem:[%s1] sm:$0x3]
        %v341 = vld [vmem:[%s2] sm:$0x3]
        %v342 = vld [vmem:[%s3] sm:$0xf]
        %v343 = vld [vmem:[%s3 + $0x4] sm:$0xf]
        %v344 = vld [vmem:[%s3 + $0x8] sm:$0xf]
        %v345 = vld [vmem:[%s3 + $0xc] sm:$0xf]
        %v346 = vld [vmem:[%s3 + $0x10] sm:$0xf]
        %v347 = vld [vmem:[%s3 + $0x14] sm:$0xf]
        %v348 = vld [vmem:[%s3 + $0x18] sm:$0xf]
        %v349 = vld [vmem:[%s3 + $0x1c] sm:$0xf]
        %v350 = vld [vmem:[%s3 + $0x20] sm:$0xf]
        %v351 = vld [vmem:[%s3 + $0x24] sm:$0xf]
        %v352 = vld [vmem:[%s3 + $0x28] sm:$0xf]
        %v353 = vld [vmem:[%s3 + $0x2c] sm:$0xf]
        %v354 = vld [vmem:[%s3 + $0x30] sm:$0xf]
        %v355 = vld [vmem:[%s3 + $0x34] sm:$0xf]
        %v356 = vld [vmem:[%s3 + $0x38] sm:$0xf]
        %v357 = vld [vmem:[%s3 + $0x3c] sm:$0xf]
        %v358 = vpack.c.bf16 %v334, %v332
        %v359 = vpack.c.bf16 %v335, %v333
        %v360 = vpack.c.bf16 %v338, %v336
        %v361 = vpack.c.bf16 %v339, %v337
        %v362 = vld [vmem:[%s4] sm:$0xff]
        %v363 = vld [vmem:[%s4 + $0x8] sm:$0xff]
        %v364 = vld [vmem:[%s4 + $0x10] sm:$0xff]
        %v365 = vld [vmem:[%s4 + $0x18] sm:$0xff]
        %v366 = vld [vmem:[%s4 + $0x20] sm:$0xff]
        %v367 = vld [vmem:[%s4 + $0x28] sm:$0xff]
        %v368 = vld [vmem:[%s4 + $0x30] sm:$0xff]
        %v369 = vld [vmem:[%s4 + $0x38] sm:$0xff]
        %v370 = vld [vmem:[%s4 + $0x40] sm:$0xff]
        %v371 = vld [vmem:[%s4 + $0x48] sm:$0xff]
        %v372 = vld [vmem:[%s4 + $0x50] sm:$0xff]
        %v373 = vld [vmem:[%s4 + $0x58] sm:$0xff]
        %v374 = vld [vmem:[%s4 + $0x60] sm:$0xff]
        %v375 = vld [vmem:[%s4 + $0x68] sm:$0xff]
        %v376 = vld [vmem:[%s4 + $0x70] sm:$0xff]
        %v377 = vld [vmem:[%s4 + $0x78] sm:$0xff]
        %379 = vset.pattern.permute.xlu0 0
        %380 = vperm.xlu0 %379, %v362
        %v381 = vpop.permute.xlu0 %380
        %384 = vset.pattern.permute.xlu0 0
        %385 = vperm.xlu0 %384, %v363
        %v386 = vpop.permute.xlu0 %385
        %389 = vset.pattern.permute.xlu0 0
        %390 = vperm.xlu0 %389, %v364
        %v391 = vpop.permute.xlu0 %390
        %394 = vset.pattern.permute.xlu0 0
        %395 = vperm.xlu0 %394, %v365
        %v396 = vpop.permute.xlu0 %395
        %399 = vset.pattern.permute.xlu0 0
        %400 = vperm.xlu0 %399, %v366
        %v401 = vpop.permute.xlu0 %400
        %404 = vset.pattern.permute.xlu0 0
        %405 = vperm.xlu0 %404, %v367
        %v406 = vpop.permute.xlu0 %405
        %409 = vset.pattern.permute.xlu0 0
        %410 = vperm.xlu0 %409, %v368
        %v411 = vpop.permute.xlu0 %410
        %414 = vset.pattern.permute.xlu0 0
        %415 = vperm.xlu0 %414, %v369
        %v416 = vpop.permute.xlu0 %415
        %419 = vset.pattern.permute.xlu0 0
        %420 = vperm.xlu0 %419, %v370
        %v421 = vpop.permute.xlu0 %420
        %424 = vset.pattern.permute.xlu0 0
        %425 = vperm.xlu0 %424, %v371
        %v426 = vpop.permute.xlu0 %425
        %429 = vset.pattern.permute.xlu0 0
        %430 = vperm.xlu0 %429, %v372
        %v431 = vpop.permute.xlu0 %430
        %434 = vset.pattern.permute.xlu0 0
        %435 = vperm.xlu0 %434, %v373
        %v436 = vpop.permute.xlu0 %435
        %439 = vset.pattern.permute.xlu0 0
        %440 = vperm.xlu0 %439, %v374
        %v441 = vpop.permute.xlu0 %440
        %444 = vset.pattern.permute.xlu0 0
        %445 = vperm.xlu0 %444, %v375
        %v446 = vpop.permute.xlu0 %445
        %449 = vset.pattern.permute.xlu0 0
        %450 = vperm.xlu0 %449, %v376
        %v451 = vpop.permute.xlu0 %450
        %454 = vset.pattern.permute.xlu0 0
        %455 = vperm.xlu0 %454, %v377
        %v456 = vpop.permute.xlu0 %455
        %v474 = vunpack.c.l.b16 %v342
        %v475 = vunpack.c.l.b16 %v343
        %v476 = vunpack.c.l.b16 %v344
        %v477 = vunpack.c.l.b16 %v345
        %v478 = vunpack.c.l.b16 %v346
        %v479 = vunpack.c.l.b16 %v347
        %v480 = vunpack.c.l.b16 %v348
        %v481 = vunpack.c.l.b16 %v349
        %v482 = vunpack.c.l.b16 %v350
        %v483 = vunpack.c.l.b16 %v351
        %v484 = vunpack.c.l.b16 %v352
        %v485 = vunpack.c.l.b16 %v353
        %v486 = vunpack.c.l.b16 %v354
        %v487 = vunpack.c.l.b16 %v355
        %v488 = vunpack.c.l.b16 %v356
        %v489 = vunpack.c.l.b16 %v357
        %v490 = vpack.c.b16 %v475, %v474
        %v491 = vpack.c.b16 %v477, %v476
        %v492 = vpack.c.b16 %v479, %v478
        %v493 = vpack.c.b16 %v481, %v480
        %v494 = vpack.c.b16 %v483, %v482
        %v495 = vpack.c.b16 %v485, %v484
        %v496 = vpack.c.b16 %v487, %v486
        %v497 = vpack.c.b16 %v489, %v488
        %vm498 = vcmask 261120
        %v500 = vsel %vm498, %v490, 0
        %v503 = vsel %vm498, %v491, 0
        %v506 = vsel %vm498, %v492, 0
        %v509 = vsel %vm498, %v493, 0
        %v512 = vsel %vm498, %v494, 0
        %v515 = vsel %vm498, %v495, 0
        %v518 = vsel %vm498, %v496, 0
        %v521 = vsel %vm498, %v497, 0
        %523 = vmatprep.subr.bf16.mxu0 %v359
        %524 = vmatpush1.bf16.msra.mxu0 %v358
        %525 = vmatprep.subr.bf16.mxu0 %v361
        %526 = vmatpush1.bf16.msra.mxu0 %v360
        %527 = vmatprep.subr.bf16.mxu0 0
        %528 = vmatpush1.bf16.msra.mxu0 0
        %529 = vmatprep.subr.bf16.mxu0 0
        %530 = vmatpush1.bf16.msra.mxu0 0
        %531 = vmatprep.subr.bf16.mxu0 0
        %532 = vmatpush1.bf16.msra.mxu0 0
        %533 = vmatprep.subr.bf16.mxu0 0
        %534 = vmatpush1.bf16.msra.mxu0 0
        %535 = vmatprep.subr.bf16.mxu0 0
        %536 = vmatpush1.bf16.msra.mxu0 0
        %537 = vmatprep.subr.bf16.mxu0 0
        %538 = vmatpush1.bf16.msra.mxu0 0
        %539 = vmatprep.subr.bf16.mxu0 0
        %540 = vmatpush1.bf16.msra.mxu0 0
        %541 = vmatprep.subr.bf16.mxu0 0
        %542 = vmatpush1.bf16.msra.mxu0 0
        %543 = vmatprep.subr.bf16.mxu0 0
        %544 = vmatpush1.bf16.msra.mxu0 0
        %545 = vmatprep.subr.bf16.mxu0 0
        %546 = vmatpush1.bf16.msra.mxu0 0
        %547 = vmatprep.subr.bf16.mxu0 0
        %548 = vmatpush1.bf16.msra.mxu0 0
        %549 = vmatprep.subr.bf16.mxu0 0
        %550 = vmatpush1.bf16.msra.mxu0 0
        %551 = vmatprep.subr.bf16.mxu0 0
        %552 = vmatpush1.bf16.msra.mxu0 0
        %553 = vmatprep.subr.bf16.mxu0 0
        %554 = vmatpush1.bf16.msra.mxu0 0
        %555 = vmatprep.mubr.bf16.mxu0 0
        %556 = vmatmul.mubr.bf16.gmra.mrb[0].mxu0 %v500
        %v557 = vpop.f32.mrb[0].mxu0
        %v558 = vadd.f32 %v381, %v557
        %v559 = vpop.f32.mrb[0].mxu0
        %v560 = vadd.f32 %v381, %v559
        %v561 = vpop.f32.mrb[0].mxu0
        %v562 = vadd.f32 %v386, %v561
        %v563 = vpop.f32.mrb[0].mxu0
        %v564 = vadd.f32 %v386, %v563
        %565 = vmatprep.mubr.bf16.mxu0 0
        %566 = vmatmul.mubr.bf16.gmra.mrb[0].mxu0 %v503
        %v567 = vpop.f32.mrb[0].mxu0
        %v568 = vadd.f32 %v391, %v567
        %v569 = vpop.f32.mrb[0].mxu0
        %v570 = vadd.f32 %v391, %v569
        %v571 = vpop.f32.mrb[0].mxu0
        %v572 = vadd.f32 %v396, %v571
        %v573 = vpop.f32.mrb[0].mxu0
        %v574 = vadd.f32 %v396, %v573
        %575 = vmatprep.mubr.bf16.mxu0 0
        %576 = vmatmul.mubr.bf16.gmra.mrb[0].mxu0 %v506
        %v577 = vpop.f32.mrb[0].mxu0
        %v578 = vadd.f32 %v401, %v577
        %v579 = vpop.f32.mrb[0].mxu0
        %v580 = vadd.f32 %v401, %v579
        %v581 = vpop.f32.mrb[0].mxu0
        %v582 = vadd.f32 %v406, %v581
        %v583 = vpop.f32.mrb[0].mxu0
        %v584 = vadd.f32 %v406, %v583
        %585 = vmatprep.mubr.bf16.mxu0 0
        %586 = vmatmul.mubr.bf16.gmra.mrb[0].mxu0 %v509
        %v587 = vpop.f32.mrb[0].mxu0
        %v588 = vadd.f32 %v411, %v587
        %v589 = vpop.f32.mrb[0].mxu0
        %v590 = vadd.f32 %v411, %v589
        %v591 = vpop.f32.mrb[0].mxu0
        %v592 = vadd.f32 %v416, %v591
        %v593 = vpop.f32.mrb[0].mxu0
        %v594 = vadd.f32 %v416, %v593
        %595 = vmatprep.mubr.bf16.mxu0 0
        %596 = vmatmul.mubr.bf16.gmra.mrb[0].mxu0 %v512
        %v597 = vpop.f32.mrb[0].mxu0
        %v598 = vadd.f32 %v421, %v597
        %v599 = vpop.f32.mrb[0].mxu0
        %v600 = vadd.f32 %v421, %v599
        %v601 = vpop.f32.mrb[0].mxu0
        %v602 = vadd.f32 %v426, %v601
        %v603 = vpop.f32.mrb[0].mxu0
        %v604 = vadd.f32 %v426, %v603
        %605 = vmatprep.mubr.bf16.mxu0 0
        %606 = vmatmul.mubr.bf16.gmra.mrb[0].mxu0 %v515
        %v607 = vpop.f32.mrb[0].mxu0
        %v608 = vadd.f32 %v431, %v607
        %v609 = vpop.f32.mrb[0].mxu0
        %v610 = vadd.f32 %v431, %v609
        %v611 = vpop.f32.mrb[0].mxu0
        %v612 = vadd.f32 %v436, %v611
        %v613 = vpop.f32.mrb[0].mxu0
        %v614 = vadd.f32 %v436, %v613
        %615 = vmatprep.mubr.bf16.mxu0 0
        %616 = vmatmul.mubr.bf16.gmra.mrb[0].mxu0 %v518
        %v617 = vpop.f32.mrb[0].mxu0
        %v618 = vadd.f32 %v441, %v617
        %v619 = vpop.f32.mrb[0].mxu0
        %v620 = vadd.f32 %v441, %v619
        %v621 = vpop.f32.mrb[0].mxu0
        %v622 = vadd.f32 %v446, %v621
        %v623 = vpop.f32.mrb[0].mxu0
        %v624 = vadd.f32 %v446, %v623
        %625 = vmatprep.mubr.bf16.mxu0 0
        %626 = vmatmul.mubr.bf16.gmra.mrb[0].mxu0 %v521
        %v627 = vpop.f32.mrb[0].mxu0
        %v628 = vadd.f32 %v451, %v627
        %v629 = vpop.f32.mrb[0].mxu0
        %v630 = vadd.f32 %v451, %v629
        %v631 = vpop.f32.mrb[0].mxu0
        %v632 = vadd.f32 %v456, %v631
        %v633 = vpop.f32.mrb[0].mxu0
        %v634 = vadd.f32 %v456, %v633
        %635 = vdwg.mxu0
        %v636 = vmax.f32 %v558, 0.0
        %v637 = vmax.f32 %v560, 0.0
        %v638 = vmax.f32 %v562, 0.0
        %v639 = vmax.f32 %v564, 0.0
        %v640 = vmax.f32 %v568, 0.0
        %v641 = vmax.f32 %v570, 0.0
        %v642 = vmax.f32 %v572, 0.0
        %v643 = vmax.f32 %v574, 0.0
        %v644 = vmax.f32 %v578, 0.0
        %v645 = vmax.f32 %v580, 0.0
        %v646 = vmax.f32 %v582, 0.0
        %v647 = vmax.f32 %v584, 0.0
        %v648 = vmax.f32 %v588, 0.0
        %v649 = vmax.f32 %v590, 0.0
        %v650 = vmax.f32 %v592, 0.0
        %v651 = vmax.f32 %v594, 0.0
        %v652 = vmax.f32 %v598, 0.0
        %v653 = vmax.f32 %v600, 0.0
        %v654 = vmax.f32 %v602, 0.0
        %v655 = vmax.f32 %v604, 0.0
        %v656 = vmax.f32 %v608, 0.0
        %v657 = vmax.f32 %v610, 0.0
        %v658 = vmax.f32 %v612, 0.0
        %v659 = vmax.f32 %v614, 0.0
        %v660 = vmax.f32 %v618, 0.0
        %v661 = vmax.f32 %v620, 0.0
        %v662 = vmax.f32 %v622, 0.0
        %v663 = vmax.f32 %v624, 0.0
        %v664 = vmax.f32 %v628, 0.0
        %v665 = vmax.f32 %v630, 0.0
        %v666 = vmax.f32 %v632, 0.0
        %v667 = vmax.f32 %v634, 0.0
        %v668 = vld [vmem:[%s5] sm:$0xff]
        %v669 = vld [vmem:[%s5 + $0x8] sm:$0xff]
        %v670 = vld [vmem:[%s5 + $0x10] sm:$0xff]
        %v671 = vld [vmem:[%s5 + $0x18] sm:$0xff]
        %v672 = vld [vmem:[%s5 + $0x20] sm:$0xff]
        %v673 = vld [vmem:[%s5 + $0x28] sm:$0xff]
        %v674 = vld [vmem:[%s5 + $0x30] sm:$0xff]
        %v675 = vld [vmem:[%s5 + $0x38] sm:$0xff]
        %v676 = vld [vmem:[%s5 + $0x40] sm:$0xff]
        %v677 = vld [vmem:[%s5 + $0x48] sm:$0xff]
        %v678 = vld [vmem:[%s5 + $0x50] sm:$0xff]
        %v679 = vld [vmem:[%s5 + $0x58] sm:$0xff]
        %v680 = vld [vmem:[%s5 + $0x60] sm:$0xff]
        %v681 = vld [vmem:[%s5 + $0x68] sm:$0xff]
        %v682 = vld [vmem:[%s5 + $0x70] sm:$0xff]
        %v683 = vld [vmem:[%s5 + $0x78] sm:$0xff]
        %684 = vrot.lane.b32.xlu0 %v636, 127
        %v685 = vpop.permute.xlu0 %684
        %686 = vrot.lane.b32.xlu0 %v638, 127
        %v687 = vpop.permute.xlu0 %686
        %688 = vrot.lane.b32.xlu0 %v640, 127
        %v689 = vpop.permute.xlu0 %688
        %690 = vrot.lane.b32.xlu0 %v642, 127
        %v691 = vpop.permute.xlu0 %690
        %692 = vrot.lane.b32.xlu0 %v644, 127
        %v693 = vpop.permute.xlu0 %692
        %694 = vrot.lane.b32.xlu0 %v646, 127
        %v695 = vpop.permute.xlu0 %694
        %696 = vrot.lane.b32.xlu0 %v648, 127
        %v697 = vpop.permute.xlu0 %696
        %698 = vrot.lane.b32.xlu0 %v650, 127
        %v699 = vpop.permute.xlu0 %698
        %700 = vrot.lane.b32.xlu0 %v652, 127
        %v701 = vpop.permute.xlu0 %700
        %702 = vrot.lane.b32.xlu0 %v654, 127
        %v703 = vpop.permute.xlu0 %702
        %704 = vrot.lane.b32.xlu0 %v656, 127
        %v705 = vpop.permute.xlu0 %704
        %706 = vrot.lane.b32.xlu0 %v658, 127
        %v707 = vpop.permute.xlu0 %706
        %708 = vrot.lane.b32.xlu0 %v660, 127
        %v709 = vpop.permute.xlu0 %708
        %710 = vrot.lane.b32.xlu0 %v662, 127
        %v711 = vpop.permute.xlu0 %710
        %712 = vrot.lane.b32.xlu0 %v664, 127
        %v713 = vpop.permute.xlu0 %712
        %714 = vrot.lane.b32.xlu0 %v666, 127
        %v715 = vpop.permute.xlu0 %714
        %716 = vrot.lane.b32.xlu0 %v637, 127
        %v717 = vpop.permute.xlu0 %716
        %718 = vrot.lane.b32.xlu0 %v639, 127
        %v719 = vpop.permute.xlu0 %718
        %720 = vrot.lane.b32.xlu0 %v641, 127
        %v721 = vpop.permute.xlu0 %720
        %722 = vrot.lane.b32.xlu0 %v643, 127
        %v723 = vpop.permute.xlu0 %722
        %724 = vrot.lane.b32.xlu0 %v645, 127
        %v725 = vpop.permute.xlu0 %724
        %726 = vrot.lane.b32.xlu0 %v647, 127
        %v727 = vpop.permute.xlu0 %726
        %728 = vrot.lane.b32.xlu0 %v649, 127
        %v729 = vpop.permute.xlu0 %728
        %730 = vrot.lane.b32.xlu0 %v651, 127
        %v731 = vpop.permute.xlu0 %730
        %732 = vrot.lane.b32.xlu0 %v653, 127
        %v733 = vpop.permute.xlu0 %732
        %734 = vrot.lane.b32.xlu0 %v655, 127
        %v735 = vpop.permute.xlu0 %734
        %736 = vrot.lane.b32.xlu0 %v657, 127
        %v737 = vpop.permute.xlu0 %736
        %738 = vrot.lane.b32.xlu0 %v659, 127
        %v739 = vpop.permute.xlu0 %738
        %740 = vrot.lane.b32.xlu0 %v661, 127
        %v741 = vpop.permute.xlu0 %740
        %742 = vrot.lane.b32.xlu0 %v663, 127
        %v743 = vpop.permute.xlu0 %742
        %744 = vrot.lane.b32.xlu0 %v665, 127
        %v745 = vpop.permute.xlu0 %744
        %746 = vrot.lane.b32.xlu0 %v667, 127
        %v747 = vpop.permute.xlu0 %746
        %v748 = vlaneseq
        %v749 = vand.u32 %v748, 127
        %vm750 = vcmp.lt.s32.totalorder %v749, 127
        %v751 = vsel %vm750, %v685, %v717
        %v752 = vsel %vm750, %v687, %v719
        %v753 = vsel %vm750, %v689, %v721
        %v754 = vsel %vm750, %v691, %v723
        %v755 = vsel %vm750, %v693, %v725
        %v756 = vsel %vm750, %v695, %v727
        %v757 = vsel %vm750, %v697, %v729
        %v758 = vsel %vm750, %v699, %v731
        %v759 = vsel %vm750, %v701, %v733
        %v760 = vsel %vm750, %v703, %v735
        %v761 = vsel %vm750, %v705, %v737
        %v762 = vsel %vm750, %v707, %v739
        %v763 = vsel %vm750, %v709, %v741
        %v764 = vsel %vm750, %v711, %v743
        %v765 = vsel %vm750, %v713, %v745
        %v766 = vsel %vm750, %v715, %v747
        %v767 = vsel %vm750, %v717, %v685
        %v768 = vsel %vm750, %v719, %v687
        %v769 = vsel %vm750, %v721, %v689
        %v770 = vsel %vm750, %v723, %v691
        %v771 = vsel %vm750, %v725, %v693
        %v772 = vsel %vm750, %v727, %v695
        %v773 = vsel %vm750, %v729, %v697
        %v774 = vsel %vm750, %v731, %v699
        %v775 = vsel %vm750, %v733, %v701
        %v776 = vsel %vm750, %v735, %v703
        %v777 = vsel %vm750, %v737, %v705
        %v778 = vsel %vm750, %v739, %v707
        %v779 = vsel %vm750, %v741, %v709
        %v780 = vsel %vm750, %v743, %v711
        %v781 = vsel %vm750, %v745, %v713
        %v782 = vsel %vm750, %v747, %v715
        %783 = vrot.lane.b32.xlu0 %v636, 1
        %v784 = vpop.permute.xlu0 %783
        %785 = vrot.lane.b32.xlu0 %v638, 1
        %v786 = vpop.permute.xlu0 %785
        %787 = vrot.lane.b32.xlu0 %v640, 1
        %v788 = vpop.permute.xlu0 %787
        %789 = vrot.lane.b32.xlu0 %v642, 1
        %v790 = vpop.permute.xlu0 %789
        %791 = vrot.lane.b32.xlu0 %v644, 1
        %v792 = vpop.permute.xlu0 %791
        %793 = vrot.lane.b32.xlu0 %v646, 1
        %v794 = vpop.permute.xlu0 %793
        %795 = vrot.lane.b32.xlu0 %v648, 1
        %v796 = vpop.permute.xlu0 %795
        %797 = vrot.lane.b32.xlu0 %v650, 1
        %v798 = vpop.permute.xlu0 %797
        %799 = vrot.lane.b32.xlu0 %v652, 1
        %v800 = vpop.permute.xlu0 %799
        %801 = vrot.lane.b32.xlu0 %v654, 1
        %v802 = vpop.permute.xlu0 %801
        %803 = vrot.lane.b32.xlu0 %v656, 1
        %v804 = vpop.permute.xlu0 %803
        %805 = vrot.lane.b32.xlu0 %v658, 1
        %v806 = vpop.permute.xlu0 %805
        %807 = vrot.lane.b32.xlu0 %v660, 1
        %v808 = vpop.permute.xlu0 %807
        %809 = vrot.lane.b32.xlu0 %v662, 1
        %v810 = vpop.permute.xlu0 %809
        %811 = vrot.lane.b32.xlu0 %v664, 1
        %v812 = vpop.permute.xlu0 %811
        %813 = vrot.lane.b32.xlu0 %v666, 1
        %v814 = vpop.permute.xlu0 %813
        %815 = vrot.lane.b32.xlu0 %v637, 1
        %v816 = vpop.permute.xlu0 %815
        %817 = vrot.lane.b32.xlu0 %v639, 1
        %v818 = vpop.permute.xlu0 %817
        %819 = vrot.lane.b32.xlu0 %v641, 1
        %v820 = vpop.permute.xlu0 %819
        %821 = vrot.lane.b32.xlu0 %v643, 1
        %v822 = vpop.permute.xlu0 %821
        %823 = vrot.lane.b32.xlu0 %v645, 1
        %v824 = vpop.permute.xlu0 %823
        %825 = vrot.lane.b32.xlu0 %v647, 1
        %v826 = vpop.permute.xlu0 %825
        %827 = vrot.lane.b32.xlu0 %v649, 1
        %v828 = vpop.permute.xlu0 %827
        %829 = vrot.lane.b32.xlu0 %v651, 1
        %v830 = vpop.permute.xlu0 %829
        %831 = vrot.lane.b32.xlu0 %v653, 1
        %v832 = vpop.permute.xlu0 %831
        %833 = vrot.lane.b32.xlu0 %v655, 1
        %v834 = vpop.permute.xlu0 %833
        %835 = vrot.lane.b32.xlu0 %v657, 1
        %v836 = vpop.permute.xlu0 %835
        %837 = vrot.lane.b32.xlu0 %v659, 1
        %v838 = vpop.permute.xlu0 %837
        %839 = vrot.lane.b32.xlu0 %v661, 1
        %v840 = vpop.permute.xlu0 %839
        %841 = vrot.lane.b32.xlu0 %v663, 1
        %v842 = vpop.permute.xlu0 %841
        %843 = vrot.lane.b32.xlu0 %v665, 1
        %v844 = vpop.permute.xlu0 %843
        %845 = vrot.lane.b32.xlu0 %v667, 1
        %v846 = vpop.permute.xlu0 %845
        %vm847 = vcmp.lt.s32.totalorder %v749, 1
        %v848 = vsel %vm847, %v784, %v816
        %v849 = vsel %vm847, %v786, %v818
        %v850 = vsel %vm847, %v788, %v820
        %v851 = vsel %vm847, %v790, %v822
        %v852 = vsel %vm847, %v792, %v824
        %v853 = vsel %vm847, %v794, %v826
        %v854 = vsel %vm847, %v796, %v828
        %v855 = vsel %vm847, %v798, %v830
        %v856 = vsel %vm847, %v800, %v832
        %v857 = vsel %vm847, %v802, %v834
        %v858 = vsel %vm847, %v804, %v836
        %v859 = vsel %vm847, %v806, %v838
        %v860 = vsel %vm847, %v808, %v840
        %v861 = vsel %vm847, %v810, %v842
        %v862 = vsel %vm847, %v812, %v844
        %v863 = vsel %vm847, %v814, %v846
        %v864 = vsel %vm847, %v816, %v784
        %v865 = vsel %vm847, %v818, %v786
        %v866 = vsel %vm847, %v820, %v788
        %v867 = vsel %vm847, %v822, %v790
        %v868 = vsel %vm847, %v824, %v792
        %v869 = vsel %vm847, %v826, %v794
        %v870 = vsel %vm847, %v828, %v796
        %v871 = vsel %vm847, %v830, %v798
        %v872 = vsel %vm847, %v832, %v800
        %v873 = vsel %vm847, %v834, %v802
        %v874 = vsel %vm847, %v836, %v804
        %v875 = vsel %vm847, %v838, %v806
        %v876 = vsel %vm847, %v840, %v808
        %v877 = vsel %vm847, %v842, %v810
        %v878 = vsel %vm847, %v844, %v812
        %v879 = vsel %vm847, %v846, %v814
        %vm880 = vcmp.eq.s32.totalorder %v340, 15
        %v881 = vsel %vm880, 1, 0
        %v882 = vlaneseq
        %v883 = vshrl.u32 %v882, 7
        %v884 = vsub.s32 0, %v883
        %v885 = vrot.slane %v881, %v884
        %v886 = vlaneseq
        %v887 = vshrl.u32 %v886, 7
        %v888 = vsub.s32 1, %v887
        %v889 = vrot.slane %v881, %v888
        %vm890 = vcmp.eq.s32.totalorder %v885, 1
        %vm891 = vcmp.eq.s32.totalorder %v889, 1
        %v892 = vsel %vm890, %v864, %v751
        %v893 = vsel %vm891, %v848, %v767
        %v894 = vsel %vm890, %v865, %v752
        %v895 = vsel %vm891, %v849, %v768
        %v896 = vsel %vm890, %v866, %v753
        %v897 = vsel %vm891, %v850, %v769
        %v898 = vsel %vm890, %v867, %v754
        %v899 = vsel %vm891, %v851, %v770
        %v900 = vsel %vm890, %v868, %v755
        %v901 = vsel %vm891, %v852, %v771
        %v902 = vsel %vm890, %v869, %v756
        %v903 = vsel %vm891, %v853, %v772
        %v904 = vsel %vm890, %v870, %v757
        %v905 = vsel %vm891, %v854, %v773
        %v906 = vsel %vm890, %v871, %v758
        %v907 = vsel %vm891, %v855, %v774
        %v908 = vsel %vm890, %v872, %v759
        %v909 = vsel %vm891, %v856, %v775
        %v910 = vsel %vm890, %v873, %v760
        %v911 = vsel %vm891, %v857, %v776
        %v912 = vsel %vm890, %v874, %v761
        %v913 = vsel %vm891, %v858, %v777
        %v914 = vsel %vm890, %v875, %v762
        %v915 = vsel %vm891, %v859, %v778
        %v916 = vsel %vm890, %v876, %v763
        %v917 = vsel %vm891, %v860, %v779
        %v918 = vsel %vm890, %v877, %v764
        %v919 = vsel %vm891, %v861, %v780
        %v920 = vsel %vm890, %v878, %v765
        %v921 = vsel %vm891, %v862, %v781
        %v922 = vsel %vm890, %v879, %v766
        %v923 = vsel %vm891, %v863, %v782
        %vm924 = vcmp.eq.s32.totalorder %v340, 0
        %v925 = vsel %vm924, 1, 0
        %v926 = vlaneseq
        %v927 = vshrl.u32 %v926, 7
        %v928 = vsub.s32 0, %v927
        %v929 = vrot.slane %v925, %v928
        %v930 = vlaneseq
        %v931 = vshrl.u32 %v930, 7
        %v932 = vsub.s32 1, %v931
        %v933 = vrot.slane %v925, %v932
        %vm934 = vcmp.eq.s32.totalorder %v929, 1
        %vm935 = vcmp.eq.s32.totalorder %v933, 1
        %v936 = vsel %vm934, %v751, %v864
        %v937 = vsel %vm935, %v767, %v848
        %v938 = vsel %vm934, %v752, %v865
        %v939 = vsel %vm935, %v768, %v849
        %v940 = vsel %vm934, %v753, %v866
        %v941 = vsel %vm935, %v769, %v850
        %v942 = vsel %vm934, %v754, %v867
        %v943 = vsel %vm935, %v770, %v851
        %v944 = vsel %vm934, %v755, %v868
        %v945 = vsel %vm935, %v771, %v852
        %v946 = vsel %vm934, %v756, %v869
        %v947 = vsel %vm935, %v772, %v853
        %v948 = vsel %vm934, %v757, %v870
        %v949 = vsel %vm935, %v773, %v854
        %v950 = vsel %vm934, %v758, %v871
        %v951 = vsel %vm935, %v774, %v855
        %v952 = vsel %vm934, %v759, %v872
        %v953 = vsel %vm935, %v775, %v856
        %v954 = vsel %vm934, %v760, %v873
        %v955 = vsel %vm935, %v776, %v857
        %v956 = vsel %vm934, %v761, %v874
        %v957 = vsel %vm935, %v777, %v858
        %v958 = vsel %vm934, %v762, %v875
        %v959 = vsel %vm935, %v778, %v859
        %v960 = vsel %vm934, %v763, %v876
        %v961 = vsel %vm935, %v779, %v860
        %v962 = vsel %vm934, %v764, %v877
        %v963 = vsel %vm935, %v780, %v861
        %v964 = vsel %vm934, %v765, %v878
        %v965 = vsel %vm935, %v781, %v862
        %v966 = vsel %vm934, %v766, %v879
        %v967 = vsel %vm935, %v782, %v863
        %969 = vset.pattern.permute.xlu0 0
        %970 = vperm.xlu0 %969, %v668
        %v971 = vpop.permute.xlu0 %970
        %974 = vset.pattern.permute.xlu0 0
        %975 = vperm.xlu0 %974, %v669
        %v976 = vpop.permute.xlu0 %975
        %979 = vset.pattern.permute.xlu0 0
        %980 = vperm.xlu0 %979, %v670
        %v981 = vpop.permute.xlu0 %980
        %984 = vset.pattern.permute.xlu0 0
        %985 = vperm.xlu0 %984, %v671
        %v986 = vpop.permute.xlu0 %985
        %989 = vset.pattern.permute.xlu0 0
        %990 = vperm.xlu0 %989, %v672
        %v991 = vpop.permute.xlu0 %990
        %994 = vset.pattern.permute.xlu0 0
        %995 = vperm.xlu0 %994, %v673
        %v996 = vpop.permute.xlu0 %995
        %999 = vset.pattern.permute.xlu0 0
        %1000 = vperm.xlu0 %999, %v674
        %v1001 = vpop.permute.xlu0 %1000
        %1004 = vset.pattern.permute.xlu0 0
        %1005 = vperm.xlu0 %1004, %v675
        %v1006 = vpop.permute.xlu0 %1005
        %1009 = vset.pattern.permute.xlu0 0
        %1010 = vperm.xlu0 %1009, %v676
        %v1011 = vpop.permute.xlu0 %1010
        %1014 = vset.pattern.permute.xlu0 0
        %1015 = vperm.xlu0 %1014, %v677
        %v1016 = vpop.permute.xlu0 %1015
        %1019 = vset.pattern.permute.xlu0 0
        %1020 = vperm.xlu0 %1019, %v678
        %v1021 = vpop.permute.xlu0 %1020
        %1024 = vset.pattern.permute.xlu0 0
        %1025 = vperm.xlu0 %1024, %v679
        %v1026 = vpop.permute.xlu0 %1025
        %1029 = vset.pattern.permute.xlu0 0
        %1030 = vperm.xlu0 %1029, %v680
        %v1031 = vpop.permute.xlu0 %1030
        %1034 = vset.pattern.permute.xlu0 0
        %1035 = vperm.xlu0 %1034, %v681
        %v1036 = vpop.permute.xlu0 %1035
        %1039 = vset.pattern.permute.xlu0 0
        %1040 = vperm.xlu0 %1039, %v682
        %v1041 = vpop.permute.xlu0 %1040
        %1044 = vset.pattern.permute.xlu0 0
        %1045 = vperm.xlu0 %1044, %v683
        %v1046 = vpop.permute.xlu0 %1045
        %v1048 = vmul.f32 %v936, %v971
        %v1049 = vmul.f32 %v937, %v971
        %v1050 = vmul.f32 %v938, %v976
        %v1051 = vmul.f32 %v939, %v976
        %v1052 = vmul.f32 %v940, %v981
        %v1053 = vmul.f32 %v941, %v981
        %v1054 = vmul.f32 %v942, %v986
        %v1055 = vmul.f32 %v943, %v986
        %v1056 = vmul.f32 %v944, %v991
        %v1057 = vmul.f32 %v945, %v991
        %v1058 = vmul.f32 %v946, %v996
        %v1059 = vmul.f32 %v947, %v996
        %v1060 = vmul.f32 %v948, %v1001
        %v1061 = vmul.f32 %v949, %v1001
        %v1062 = vmul.f32 %v950, %v1006
        %v1063 = vmul.f32 %v951, %v1006
        %v1064 = vmul.f32 %v952, %v1011
        %v1065 = vmul.f32 %v953, %v1011
        %v1066 = vmul.f32 %v954, %v1016
        %v1067 = vmul.f32 %v955, %v1016
        %v1068 = vmul.f32 %v956, %v1021
        %v1069 = vmul.f32 %v957, %v1021
        %v1070 = vmul.f32 %v958, %v1026
        %v1071 = vmul.f32 %v959, %v1026
        %v1072 = vmul.f32 %v960, %v1031
        %v1073 = vmul.f32 %v961, %v1031
        %v1074 = vmul.f32 %v962, %v1036
        %v1075 = vmul.f32 %v963, %v1036
        %v1076 = vmul.f32 %v964, %v1041
        %v1077 = vmul.f32 %v965, %v1041
        %v1078 = vmul.f32 %v966, %v1046
        %v1079 = vmul.f32 %v967, %v1046
        %1080 = vset.pattern.permute.xlu0 1
        %1081 = vperm.xlu0 %1080, %v668
        %v1082 = vpop.permute.xlu0 %1081
        %1084 = vset.pattern.permute.xlu0 1
        %1085 = vperm.xlu0 %1084, %v669
        %v1086 = vpop.permute.xlu0 %1085
        %1088 = vset.pattern.permute.xlu0 1
        %1089 = vperm.xlu0 %1088, %v670
        %v1090 = vpop.permute.xlu0 %1089
        %1092 = vset.pattern.permute.xlu0 1
        %1093 = vperm.xlu0 %1092, %v671
        %v1094 = vpop.permute.xlu0 %1093
        %1096 = vset.pattern.permute.xlu0 1
        %1097 = vperm.xlu0 %1096, %v672
        %v1098 = vpop.permute.xlu0 %1097
        %1100 = vset.pattern.permute.xlu0 1
        %1101 = vperm.xlu0 %1100, %v673
        %v1102 = vpop.permute.xlu0 %1101
        %1104 = vset.pattern.permute.xlu0 1
        %1105 = vperm.xlu0 %1104, %v674
        %v1106 = vpop.permute.xlu0 %1105
        %1108 = vset.pattern.permute.xlu0 1
        %1109 = vperm.xlu0 %1108, %v675
        %v1110 = vpop.permute.xlu0 %1109
        %1112 = vset.pattern.permute.xlu0 1
        %1113 = vperm.xlu0 %1112, %v676
        %v1114 = vpop.permute.xlu0 %1113
        %1116 = vset.pattern.permute.xlu0 1
        %1117 = vperm.xlu0 %1116, %v677
        %v1118 = vpop.permute.xlu0 %1117
        %1120 = vset.pattern.permute.xlu0 1
        %1121 = vperm.xlu0 %1120, %v678
        %v1122 = vpop.permute.xlu0 %1121
        %1124 = vset.pattern.permute.xlu0 1
        %1125 = vperm.xlu0 %1124, %v679
        %v1126 = vpop.permute.xlu0 %1125
        %1128 = vset.pattern.permute.xlu0 1
        %1129 = vperm.xlu0 %1128, %v680
        %v1130 = vpop.permute.xlu0 %1129
        %1132 = vset.pattern.permute.xlu0 1
        %1133 = vperm.xlu0 %1132, %v681
        %v1134 = vpop.permute.xlu0 %1133
        %1136 = vset.pattern.permute.xlu0 1
        %1137 = vperm.xlu0 %1136, %v682
        %v1138 = vpop.permute.xlu0 %1137
        %1140 = vset.pattern.permute.xlu0 1
        %1141 = vperm.xlu0 %1140, %v683
        %v1142 = vpop.permute.xlu0 %1141
        %v1144 = vmul.f32 %v636, %v1082
        %v1145 = vmul.f32 %v637, %v1082
        %v1146 = vmul.f32 %v638, %v1086
        %v1147 = vmul.f32 %v639, %v1086
        %v1148 = vmul.f32 %v640, %v1090
        %v1149 = vmul.f32 %v641, %v1090
        %v1150 = vmul.f32 %v642, %v1094
        %v1151 = vmul.f32 %v643, %v1094
        %v1152 = vmul.f32 %v644, %v1098
        %v1153 = vmul.f32 %v645, %v1098
        %v1154 = vmul.f32 %v646, %v1102
        %v1155 = vmul.f32 %v647, %v1102
        %v1156 = vmul.f32 %v648, %v1106
        %v1157 = vmul.f32 %v649, %v1106
        %v1158 = vmul.f32 %v650, %v1110
        %v1159 = vmul.f32 %v651, %v1110
        %v1160 = vmul.f32 %v652, %v1114
        %v1161 = vmul.f32 %v653, %v1114
        %v1162 = vmul.f32 %v654, %v1118
        %v1163 = vmul.f32 %v655, %v1118
        %v1164 = vmul.f32 %v656, %v1122
        %v1165 = vmul.f32 %v657, %v1122
        %v1166 = vmul.f32 %v658, %v1126
        %v1167 = vmul.f32 %v659, %v1126
        %v1168 = vmul.f32 %v660, %v1130
        %v1169 = vmul.f32 %v661, %v1130
        %v1170 = vmul.f32 %v662, %v1134
        %v1171 = vmul.f32 %v663, %v1134
        %v1172 = vmul.f32 %v664, %v1138
        %v1173 = vmul.f32 %v665, %v1138
        %v1174 = vmul.f32 %v666, %v1142
        %v1175 = vmul.f32 %v667, %v1142
        %v1176 = vadd.f32 %v1048, %v1144
        %v1177 = vadd.f32 %v1049, %v1145
        %v1178 = vadd.f32 %v1050, %v1146
        %v1179 = vadd.f32 %v1051, %v1147
        %v1180 = vadd.f32 %v1052, %v1148
        %v1181 = vadd.f32 %v1053, %v1149
        %v1182 = vadd.f32 %v1054, %v1150
        %v1183 = vadd.f32 %v1055, %v1151
        %v1184 = vadd.f32 %v1056, %v1152
        %v1185 = vadd.f32 %v1057, %v1153
        %v1186 = vadd.f32 %v1058, %v1154
        %v1187 = vadd.f32 %v1059, %v1155
        %v1188 = vadd.f32 %v1060, %v1156
        %v1189 = vadd.f32 %v1061, %v1157
        %v1190 = vadd.f32 %v1062, %v1158
        %v1191 = vadd.f32 %v1063, %v1159
        %v1192 = vadd.f32 %v1064, %v1160
        %v1193 = vadd.f32 %v1065, %v1161
        %v1194 = vadd.f32 %v1066, %v1162
        %v1195 = vadd.f32 %v1067, %v1163
        %v1196 = vadd.f32 %v1068, %v1164
        %v1197 = vadd.f32 %v1069, %v1165
        %v1198 = vadd.f32 %v1070, %v1166
        %v1199 = vadd.f32 %v1071, %v1167
        %v1200 = vadd.f32 %v1072, %v1168
        %v1201 = vadd.f32 %v1073, %v1169
        %v1202 = vadd.f32 %v1074, %v1170
        %v1203 = vadd.f32 %v1075, %v1171
        %v1204 = vadd.f32 %v1076, %v1172
        %v1205 = vadd.f32 %v1077, %v1173
        %v1206 = vadd.f32 %v1078, %v1174
        %v1207 = vadd.f32 %v1079, %v1175
        %1208 = vset.pattern.permute.xlu0 2
        %1209 = vperm.xlu0 %1208, %v668
        %v1210 = vpop.permute.xlu0 %1209
        %1212 = vset.pattern.permute.xlu0 2
        %1213 = vperm.xlu0 %1212, %v669
        %v1214 = vpop.permute.xlu0 %1213
        %1216 = vset.pattern.permute.xlu0 2
        %1217 = vperm.xlu0 %1216, %v670
        %v1218 = vpop.permute.xlu0 %1217
        %1220 = vset.pattern.permute.xlu0 2
        %1221 = vperm.xlu0 %1220, %v671
        %v1222 = vpop.permute.xlu0 %1221
        %1224 = vset.pattern.permute.xlu0 2
        %1225 = vperm.xlu0 %1224, %v672
        %v1226 = vpop.permute.xlu0 %1225
        %1228 = vset.pattern.permute.xlu0 2
        %1229 = vperm.xlu0 %1228, %v673
        %v1230 = vpop.permute.xlu0 %1229
        %1232 = vset.pattern.permute.xlu0 2
        %1233 = vperm.xlu0 %1232, %v674
        %v1234 = vpop.permute.xlu0 %1233
        %1236 = vset.pattern.permute.xlu0 2
        %1237 = vperm.xlu0 %1236, %v675
        %v1238 = vpop.permute.xlu0 %1237
        %1240 = vset.pattern.permute.xlu0 2
        %1241 = vperm.xlu0 %1240, %v676
        %v1242 = vpop.permute.xlu0 %1241
        %1244 = vset.pattern.permute.xlu0 2
        %1245 = vperm.xlu0 %1244, %v677
        %v1246 = vpop.permute.xlu0 %1245
        %1248 = vset.pattern.permute.xlu0 2
        %1249 = vperm.xlu0 %1248, %v678
        %v1250 = vpop.permute.xlu0 %1249
        %1252 = vset.pattern.permute.xlu0 2
        %1253 = vperm.xlu0 %1252, %v679
        %v1254 = vpop.permute.xlu0 %1253
        %1256 = vset.pattern.permute.xlu0 2
        %1257 = vperm.xlu0 %1256, %v680
        %v1258 = vpop.permute.xlu0 %1257
        %1260 = vset.pattern.permute.xlu0 2
        %1261 = vperm.xlu0 %1260, %v681
        %v1262 = vpop.permute.xlu0 %1261
        %1264 = vset.pattern.permute.xlu0 2
        %1265 = vperm.xlu0 %1264, %v682
        %v1266 = vpop.permute.xlu0 %1265
        %1268 = vset.pattern.permute.xlu0 2
        %1269 = vperm.xlu0 %1268, %v683
        %v1270 = vpop.permute.xlu0 %1269
        %v1272 = vmul.f32 %v892, %v1210
        %v1273 = vmul.f32 %v893, %v1210
        %v1274 = vmul.f32 %v894, %v1214
        %v1275 = vmul.f32 %v895, %v1214
        %v1276 = vmul.f32 %v896, %v1218
        %v1277 = vmul.f32 %v897, %v1218
        %v1278 = vmul.f32 %v898, %v1222
        %v1279 = vmul.f32 %v899, %v1222
        %v1280 = vmul.f32 %v900, %v1226
        %v1281 = vmul.f32 %v901, %v1226
        %v1282 = vmul.f32 %v902, %v1230
        %v1283 = vmul.f32 %v903, %v1230
        %v1284 = vmul.f32 %v904, %v1234
        %v1285 = vmul.f32 %v905, %v1234
        %v1286 = vmul.f32 %v906, %v1238
        %v1287 = vmul.f32 %v907, %v1238
        %v1288 = vmul.f32 %v908, %v1242
        %v1289 = vmul.f32 %v909, %v1242
        %v1290 = vmul.f32 %v910, %v1246
        %v1291 = vmul.f32 %v911, %v1246
        %v1292 = vmul.f32 %v912, %v1250
        %v1293 = vmul.f32 %v913, %v1250
        %v1294 = vmul.f32 %v914, %v1254
        %v1295 = vmul.f32 %v915, %v1254
        %v1296 = vmul.f32 %v916, %v1258
        %v1297 = vmul.f32 %v917, %v1258
        %v1298 = vmul.f32 %v918, %v1262
        %v1299 = vmul.f32 %v919, %v1262
        %v1300 = vmul.f32 %v920, %v1266
        %v1301 = vmul.f32 %v921, %v1266
        %v1302 = vmul.f32 %v922, %v1270
        %v1303 = vmul.f32 %v923, %v1270
        %v1304 = vadd.f32 %v1176, %v1272
        %v1305 = vadd.f32 %v1177, %v1273
        %v1306 = vadd.f32 %v1178, %v1274
        %v1307 = vadd.f32 %v1179, %v1275
        %v1308 = vadd.f32 %v1180, %v1276
        %v1309 = vadd.f32 %v1181, %v1277
        %v1310 = vadd.f32 %v1182, %v1278
        %v1311 = vadd.f32 %v1183, %v1279
        %v1312 = vadd.f32 %v1184, %v1280
        %v1313 = vadd.f32 %v1185, %v1281
        %v1314 = vadd.f32 %v1186, %v1282
        %v1315 = vadd.f32 %v1187, %v1283
        %v1316 = vadd.f32 %v1188, %v1284
        %v1317 = vadd.f32 %v1189, %v1285
        %v1318 = vadd.f32 %v1190, %v1286
        %v1319 = vadd.f32 %v1191, %v1287
        %v1320 = vadd.f32 %v1192, %v1288
        %v1321 = vadd.f32 %v1193, %v1289
        %v1322 = vadd.f32 %v1194, %v1290
        %v1323 = vadd.f32 %v1195, %v1291
        %v1324 = vadd.f32 %v1196, %v1292
        %v1325 = vadd.f32 %v1197, %v1293
        %v1326 = vadd.f32 %v1198, %v1294
        %v1327 = vadd.f32 %v1199, %v1295
        %v1328 = vadd.f32 %v1200, %v1296
        %v1329 = vadd.f32 %v1201, %v1297
        %v1330 = vadd.f32 %v1202, %v1298
        %v1331 = vadd.f32 %v1203, %v1299
        %v1332 = vadd.f32 %v1204, %v1300
        %v1333 = vadd.f32 %v1205, %v1301
        %v1334 = vadd.f32 %v1206, %v1302
        %v1335 = vadd.f32 %v1207, %v1303
        %1336 = vset.pattern.permute.xlu0 3
        %1337 = vperm.xlu0 %1336, %v668
        %v1338 = vpop.permute.xlu0 %1337
        %1340 = vset.pattern.permute.xlu0 3
        %1341 = vperm.xlu0 %1340, %v669
        %v1342 = vpop.permute.xlu0 %1341
        %1344 = vset.pattern.permute.xlu0 3
        %1345 = vperm.xlu0 %1344, %v670
        %v1346 = vpop.permute.xlu0 %1345
        %1348 = vset.pattern.permute.xlu0 3
        %1349 = vperm.xlu0 %1348, %v671
        %v1350 = vpop.permute.xlu0 %1349
        %1352 = vset.pattern.permute.xlu0 3
        %1353 = vperm.xlu0 %1352, %v672
        %v1354 = vpop.permute.xlu0 %1353
        %1356 = vset.pattern.permute.xlu0 3
        %1357 = vperm.xlu0 %1356, %v673
        %v1358 = vpop.permute.xlu0 %1357
        %1360 = vset.pattern.permute.xlu0 3
        %1361 = vperm.xlu0 %1360, %v674
        %v1362 = vpop.permute.xlu0 %1361
        %1364 = vset.pattern.permute.xlu0 3
        %1365 = vperm.xlu0 %1364, %v675
        %v1366 = vpop.permute.xlu0 %1365
        %1368 = vset.pattern.permute.xlu0 3
        %1369 = vperm.xlu0 %1368, %v676
        %v1370 = vpop.permute.xlu0 %1369
        %1372 = vset.pattern.permute.xlu0 3
        %1373 = vperm.xlu0 %1372, %v677
        %v1374 = vpop.permute.xlu0 %1373
        %1376 = vset.pattern.permute.xlu0 3
        %1377 = vperm.xlu0 %1376, %v678
        %v1378 = vpop.permute.xlu0 %1377
        %1380 = vset.pattern.permute.xlu0 3
        %1381 = vperm.xlu0 %1380, %v679
        %v1382 = vpop.permute.xlu0 %1381
        %1384 = vset.pattern.permute.xlu0 3
        %1385 = vperm.xlu0 %1384, %v680
        %v1386 = vpop.permute.xlu0 %1385
        %1388 = vset.pattern.permute.xlu0 3
        %1389 = vperm.xlu0 %1388, %v681
        %v1390 = vpop.permute.xlu0 %1389
        %1392 = vset.pattern.permute.xlu0 3
        %1393 = vperm.xlu0 %1392, %v682
        %v1394 = vpop.permute.xlu0 %1393
        %1396 = vset.pattern.permute.xlu0 3
        %1397 = vperm.xlu0 %1396, %v683
        %v1398 = vpop.permute.xlu0 %1397
        %v1400 = vmul.f32 %v936, %v1338
        %v1401 = vmul.f32 %v937, %v1338
        %v1402 = vmul.f32 %v938, %v1342
        %v1403 = vmul.f32 %v939, %v1342
        %v1404 = vmul.f32 %v940, %v1346
        %v1405 = vmul.f32 %v941, %v1346
        %v1406 = vmul.f32 %v942, %v1350
        %v1407 = vmul.f32 %v943, %v1350
        %v1408 = vmul.f32 %v944, %v1354
        %v1409 = vmul.f32 %v945, %v1354
        %v1410 = vmul.f32 %v946, %v1358
        %v1411 = vmul.f32 %v947, %v1358
        %v1412 = vmul.f32 %v948, %v1362
        %v1413 = vmul.f32 %v949, %v1362
        %v1414 = vmul.f32 %v950, %v1366
        %v1415 = vmul.f32 %v951, %v1366
        %v1416 = vmul.f32 %v952, %v1370
        %v1417 = vmul.f32 %v953, %v1370
        %v1418 = vmul.f32 %v954, %v1374
        %v1419 = vmul.f32 %v955, %v1374
        %v1420 = vmul.f32 %v956, %v1378
        %v1421 = vmul.f32 %v957, %v1378
        %v1422 = vmul.f32 %v958, %v1382
        %v1423 = vmul.f32 %v959, %v1382
        %v1424 = vmul.f32 %v960, %v1386
        %v1425 = vmul.f32 %v961, %v1386
        %v1426 = vmul.f32 %v962, %v1390
        %v1427 = vmul.f32 %v963, %v1390
        %v1428 = vmul.f32 %v964, %v1394
        %v1429 = vmul.f32 %v965, %v1394
        %v1430 = vmul.f32 %v966, %v1398
        %v1431 = vmul.f32 %v967, %v1398
        %1432 = vset.pattern.permute.xlu0 4
        %1433 = vperm.xlu0 %1432, %v668
        %v1434 = vpop.permute.xlu0 %1433
        %1436 = vset.pattern.permute.xlu0 4
        %1437 = vperm.xlu0 %1436, %v669
        %v1438 = vpop.permute.xlu0 %1437
        %1440 = vset.pattern.permute.xlu0 4
        %1441 = vperm.xlu0 %1440, %v670
        %v1442 = vpop.permute.xlu0 %1441
        %1444 = vset.pattern.permute.xlu0 4
        %1445 = vperm.xlu0 %1444, %v671
        %v1446 = vpop.permute.xlu0 %1445
        %1448 = vset.pattern.permute.xlu0 4
        %1449 = vperm.xlu0 %1448, %v672
        %v1450 = vpop.permute.xlu0 %1449
        %1452 = vset.pattern.permute.xlu0 4
        %1453 = vperm.xlu0 %1452, %v673
        %v1454 = vpop.permute.xlu0 %1453
        %1456 = vset.pattern.permute.xlu0 4
        %1457 = vperm.xlu0 %1456, %v674
        %v1458 = vpop.permute.xlu0 %1457
        %1460 = vset.pattern.permute.xlu0 4
        %1461 = vperm.xlu0 %1460, %v675
        %v1462 = vpop.permute.xlu0 %1461
        %1464 = vset.pattern.permute.xlu0 4
        %1465 = vperm.xlu0 %1464, %v676
        %v1466 = vpop.permute.xlu0 %1465
        %1468 = vset.pattern.permute.xlu0 4
        %1469 = vperm.xlu0 %1468, %v677
        %v1470 = vpop.permute.xlu0 %1469
        %1472 = vset.pattern.permute.xlu0 4
        %1473 = vperm.xlu0 %1472, %v678
        %v1474 = vpop.permute.xlu0 %1473
        %1476 = vset.pattern.permute.xlu0 4
        %1477 = vperm.xlu0 %1476, %v679
        %v1478 = vpop.permute.xlu0 %1477
        %1480 = vset.pattern.permute.xlu0 4
        %1481 = vperm.xlu0 %1480, %v680
        %v1482 = vpop.permute.xlu0 %1481
        %1484 = vset.pattern.permute.xlu0 4
        %1485 = vperm.xlu0 %1484, %v681
        %v1486 = vpop.permute.xlu0 %1485
        %1488 = vset.pattern.permute.xlu0 4
        %1489 = vperm.xlu0 %1488, %v682
        %v1490 = vpop.permute.xlu0 %1489
        %1492 = vset.pattern.permute.xlu0 4
        %1493 = vperm.xlu0 %1492, %v683
        %v1494 = vpop.permute.xlu0 %1493
        %v1496 = vmul.f32 %v636, %v1434
        %v1497 = vmul.f32 %v637, %v1434
        %v1498 = vmul.f32 %v638, %v1438
        %v1499 = vmul.f32 %v639, %v1438
        %v1500 = vmul.f32 %v640, %v1442
        %v1501 = vmul.f32 %v641, %v1442
        %v1502 = vmul.f32 %v642, %v1446
        %v1503 = vmul.f32 %v643, %v1446
        %v1504 = vmul.f32 %v644, %v1450
        %v1505 = vmul.f32 %v645, %v1450
        %v1506 = vmul.f32 %v646, %v1454
        %v1507 = vmul.f32 %v647, %v1454
        %v1508 = vmul.f32 %v648, %v1458
        %v1509 = vmul.f32 %v649, %v1458
        %v1510 = vmul.f32 %v650, %v1462
        %v1511 = vmul.f32 %v651, %v1462
        %v1512 = vmul.f32 %v652, %v1466
        %v1513 = vmul.f32 %v653, %v1466
        %v1514 = vmul.f32 %v654, %v1470
        %v1515 = vmul.f32 %v655, %v1470
        %v1516 = vmul.f32 %v656, %v1474
        %v1517 = vmul.f32 %v657, %v1474
        %v1518 = vmul.f32 %v658, %v1478
        %v1519 = vmul.f32 %v659, %v1478
        %v1520 = vmul.f32 %v660, %v1482
        %v1521 = vmul.f32 %v661, %v1482
        %v1522 = vmul.f32 %v662, %v1486
        %v1523 = vmul.f32 %v663, %v1486
        %v1524 = vmul.f32 %v664, %v1490
        %v1525 = vmul.f32 %v665, %v1490
        %v1526 = vmul.f32 %v666, %v1494
        %v1527 = vmul.f32 %v667, %v1494
        %v1528 = vadd.f32 %v1400, %v1496
        %v1529 = vadd.f32 %v1401, %v1497
        %v1530 = vadd.f32 %v1402, %v1498
        %v1531 = vadd.f32 %v1403, %v1499
        %v1532 = vadd.f32 %v1404, %v1500
        %v1533 = vadd.f32 %v1405, %v1501
        %v1534 = vadd.f32 %v1406, %v1502
        %v1535 = vadd.f32 %v1407, %v1503
        %v1536 = vadd.f32 %v1408, %v1504
        %v1537 = vadd.f32 %v1409, %v1505
        %v1538 = vadd.f32 %v1410, %v1506
        %v1539 = vadd.f32 %v1411, %v1507
        %v1540 = vadd.f32 %v1412, %v1508
        %v1541 = vadd.f32 %v1413, %v1509
        %v1542 = vadd.f32 %v1414, %v1510
        %v1543 = vadd.f32 %v1415, %v1511
        %v1544 = vadd.f32 %v1416, %v1512
        %v1545 = vadd.f32 %v1417, %v1513
        %v1546 = vadd.f32 %v1418, %v1514
        %v1547 = vadd.f32 %v1419, %v1515
        %v1548 = vadd.f32 %v1420, %v1516
        %v1549 = vadd.f32 %v1421, %v1517
        %v1550 = vadd.f32 %v1422, %v1518
        %v1551 = vadd.f32 %v1423, %v1519
        %v1552 = vadd.f32 %v1424, %v1520
        %v1553 = vadd.f32 %v1425, %v1521
        %v1554 = vadd.f32 %v1426, %v1522
        %v1555 = vadd.f32 %v1427, %v1523
        %v1556 = vadd.f32 %v1428, %v1524
        %v1557 = vadd.f32 %v1429, %v1525
        %v1558 = vadd.f32 %v1430, %v1526
        %v1559 = vadd.f32 %v1431, %v1527
        %1560 = vset.pattern.permute.xlu0 5
        %1561 = vperm.xlu0 %1560, %v668
        %v1562 = vpop.permute.xlu0 %1561
        %1564 = vset.pattern.permute.xlu0 5
        %1565 = vperm.xlu0 %1564, %v669
        %v1566 = vpop.permute.xlu0 %1565
        %1568 = vset.pattern.permute.xlu0 5
        %1569 = vperm.xlu0 %1568, %v670
        %v1570 = vpop.permute.xlu0 %1569
        %1572 = vset.pattern.permute.xlu0 5
        %1573 = vperm.xlu0 %1572, %v671
        %v1574 = vpop.permute.xlu0 %1573
        %1576 = vset.pattern.permute.xlu0 5
        %1577 = vperm.xlu0 %1576, %v672
        %v1578 = vpop.permute.xlu0 %1577
        %1580 = vset.pattern.permute.xlu0 5
        %1581 = vperm.xlu0 %1580, %v673
        %v1582 = vpop.permute.xlu0 %1581
        %1584 = vset.pattern.permute.xlu0 5
        %1585 = vperm.xlu0 %1584, %v674
        %v1586 = vpop.permute.xlu0 %1585
        %1588 = vset.pattern.permute.xlu0 5
        %1589 = vperm.xlu0 %1588, %v675
        %v1590 = vpop.permute.xlu0 %1589
        %1592 = vset.pattern.permute.xlu0 5
        %1593 = vperm.xlu0 %1592, %v676
        %v1594 = vpop.permute.xlu0 %1593
        %1596 = vset.pattern.permute.xlu0 5
        %1597 = vperm.xlu0 %1596, %v677
        %v1598 = vpop.permute.xlu0 %1597
        %1600 = vset.pattern.permute.xlu0 5
        %1601 = vperm.xlu0 %1600, %v678
        %v1602 = vpop.permute.xlu0 %1601
        %1604 = vset.pattern.permute.xlu0 5
        %1605 = vperm.xlu0 %1604, %v679
        %v1606 = vpop.permute.xlu0 %1605
        %1608 = vset.pattern.permute.xlu0 5
        %1609 = vperm.xlu0 %1608, %v680
        %v1610 = vpop.permute.xlu0 %1609
        %1612 = vset.pattern.permute.xlu0 5
        %1613 = vperm.xlu0 %1612, %v681
        %v1614 = vpop.permute.xlu0 %1613
        %1616 = vset.pattern.permute.xlu0 5
        %1617 = vperm.xlu0 %1616, %v682
        %v1618 = vpop.permute.xlu0 %1617
        %1620 = vset.pattern.permute.xlu0 5
        %1621 = vperm.xlu0 %1620, %v683
        %v1622 = vpop.permute.xlu0 %1621
        %v1624 = vmul.f32 %v892, %v1562
        %v1625 = vmul.f32 %v893, %v1562
        %v1626 = vmul.f32 %v894, %v1566
        %v1627 = vmul.f32 %v895, %v1566
        %v1628 = vmul.f32 %v896, %v1570
        %v1629 = vmul.f32 %v897, %v1570
        %v1630 = vmul.f32 %v898, %v1574
        %v1631 = vmul.f32 %v899, %v1574
        %v1632 = vmul.f32 %v900, %v1578
        %v1633 = vmul.f32 %v901, %v1578
        %v1634 = vmul.f32 %v902, %v1582
        %v1635 = vmul.f32 %v903, %v1582
        %v1636 = vmul.f32 %v904, %v1586
        %v1637 = vmul.f32 %v905, %v1586
        %v1638 = vmul.f32 %v906, %v1590
        %v1639 = vmul.f32 %v907, %v1590
        %v1640 = vmul.f32 %v908, %v1594
        %v1641 = vmul.f32 %v909, %v1594
        %v1642 = vmul.f32 %v910, %v1598
        %v1643 = vmul.f32 %v911, %v1598
        %v1644 = vmul.f32 %v912, %v1602
        %v1645 = vmul.f32 %v913, %v1602
        %v1646 = vmul.f32 %v914, %v1606
        %v1647 = vmul.f32 %v915, %v1606
        %v1648 = vmul.f32 %v916, %v1610
        %v1649 = vmul.f32 %v917, %v1610
        %v1650 = vmul.f32 %v918, %v1614
        %v1651 = vmul.f32 %v919, %v1614
        %v1652 = vmul.f32 %v920, %v1618
        %v1653 = vmul.f32 %v921, %v1618
        %v1654 = vmul.f32 %v922, %v1622
        %v1655 = vmul.f32 %v923, %v1622
        %v1656 = vadd.f32 %v1528, %v1624
        %v1657 = vadd.f32 %v1529, %v1625
        %v1658 = vadd.f32 %v1530, %v1626
        %v1659 = vadd.f32 %v1531, %v1627
        %v1660 = vadd.f32 %v1532, %v1628
        %v1661 = vadd.f32 %v1533, %v1629
        %v1662 = vadd.f32 %v1534, %v1630
        %v1663 = vadd.f32 %v1535, %v1631
        %v1664 = vadd.f32 %v1536, %v1632
        %v1665 = vadd.f32 %v1537, %v1633
        %v1666 = vadd.f32 %v1538, %v1634
        %v1667 = vadd.f32 %v1539, %v1635
        %v1668 = vadd.f32 %v1540, %v1636
        %v1669 = vadd.f32 %v1541, %v1637
        %v1670 = vadd.f32 %v1542, %v1638
        %v1671 = vadd.f32 %v1543, %v1639
        %v1672 = vadd.f32 %v1544, %v1640
        %v1673 = vadd.f32 %v1545, %v1641
        %v1674 = vadd.f32 %v1546, %v1642
        %v1675 = vadd.f32 %v1547, %v1643
        %v1676 = vadd.f32 %v1548, %v1644
        %v1677 = vadd.f32 %v1549, %v1645
        %v1678 = vadd.f32 %v1550, %v1646
        %v1679 = vadd.f32 %v1551, %v1647
        %v1680 = vadd.f32 %v1552, %v1648
        %v1681 = vadd.f32 %v1553, %v1649
        %v1682 = vadd.f32 %v1554, %v1650
        %v1683 = vadd.f32 %v1555, %v1651
        %v1684 = vadd.f32 %v1556, %v1652
        %v1685 = vadd.f32 %v1557, %v1653
        %v1686 = vadd.f32 %v1558, %v1654
        %v1687 = vadd.f32 %v1559, %v1655
        %1688 = vset.pattern.permute.xlu0 6
        %1689 = vperm.xlu0 %1688, %v668
        %v1690 = vpop.permute.xlu0 %1689
        %1692 = vset.pattern.permute.xlu0 6
        %1693 = vperm.xlu0 %1692, %v669
        %v1694 = vpop.permute.xlu0 %1693
        %1696 = vset.pattern.permute.xlu0 6
        %1697 = vperm.xlu0 %1696, %v670
        %v1698 = vpop.permute.xlu0 %1697
        %1700 = vset.pattern.permute.xlu0 6
        %1701 = vperm.xlu0 %1700, %v671
        %v1702 = vpop.permute.xlu0 %1701
        %1704 = vset.pattern.permute.xlu0 6
        %1705 = vperm.xlu0 %1704, %v672
        %v1706 = vpop.permute.xlu0 %1705
        %1708 = vset.pattern.permute.xlu0 6
        %1709 = vperm.xlu0 %1708, %v673
        %v1710 = vpop.permute.xlu0 %1709
        %1712 = vset.pattern.permute.xlu0 6
        %1713 = vperm.xlu0 %1712, %v674
        %v1714 = vpop.permute.xlu0 %1713
        %1716 = vset.pattern.permute.xlu0 6
        %1717 = vperm.xlu0 %1716, %v675
        %v1718 = vpop.permute.xlu0 %1717
        %1720 = vset.pattern.permute.xlu0 6
        %1721 = vperm.xlu0 %1720, %v676
        %v1722 = vpop.permute.xlu0 %1721
        %1724 = vset.pattern.permute.xlu0 6
        %1725 = vperm.xlu0 %1724, %v677
        %v1726 = vpop.permute.xlu0 %1725
        %1728 = vset.pattern.permute.xlu0 6
        %1729 = vperm.xlu0 %1728, %v678
        %v1730 = vpop.permute.xlu0 %1729
        %1732 = vset.pattern.permute.xlu0 6
        %1733 = vperm.xlu0 %1732, %v679
        %v1734 = vpop.permute.xlu0 %1733
        %1736 = vset.pattern.permute.xlu0 6
        %1737 = vperm.xlu0 %1736, %v680
        %v1738 = vpop.permute.xlu0 %1737
        %1740 = vset.pattern.permute.xlu0 6
        %1741 = vperm.xlu0 %1740, %v681
        %v1742 = vpop.permute.xlu0 %1741
        %1744 = vset.pattern.permute.xlu0 6
        %1745 = vperm.xlu0 %1744, %v682
        %v1746 = vpop.permute.xlu0 %1745
        %1748 = vset.pattern.permute.xlu0 6
        %1749 = vperm.xlu0 %1748, %v683
        %v1750 = vpop.permute.xlu0 %1749
        %v1752 = vmul.f32 %v936, %v1690
        %v1753 = vmul.f32 %v937, %v1690
        %v1754 = vmul.f32 %v938, %v1694
        %v1755 = vmul.f32 %v939, %v1694
        %v1756 = vmul.f32 %v940, %v1698
        %v1757 = vmul.f32 %v941, %v1698
        %v1758 = vmul.f32 %v942, %v1702
        %v1759 = vmul.f32 %v943, %v1702
        %v1760 = vmul.f32 %v944, %v1706
        %v1761 = vmul.f32 %v945, %v1706
        %v1762 = vmul.f32 %v946, %v1710
        %v1763 = vmul.f32 %v947, %v1710
        %v1764 = vmul.f32 %v948, %v1714
        %v1765 = vmul.f32 %v949, %v1714
        %v1766 = vmul.f32 %v950, %v1718
        %v1767 = vmul.f32 %v951, %v1718
        %v1768 = vmul.f32 %v952, %v1722
        %v1769 = vmul.f32 %v953, %v1722
        %v1770 = vmul.f32 %v954, %v1726
        %v1771 = vmul.f32 %v955, %v1726
        %v1772 = vmul.f32 %v956, %v1730
        %v1773 = vmul.f32 %v957, %v1730
        %v1774 = vmul.f32 %v958, %v1734
        %v1775 = vmul.f32 %v959, %v1734
        %v1776 = vmul.f32 %v960, %v1738
        %v1777 = vmul.f32 %v961, %v1738
        %v1778 = vmul.f32 %v962, %v1742
        %v1779 = vmul.f32 %v963, %v1742
        %v1780 = vmul.f32 %v964, %v1746
        %v1781 = vmul.f32 %v965, %v1746
        %v1782 = vmul.f32 %v966, %v1750
        %v1783 = vmul.f32 %v967, %v1750
        %1784 = vset.pattern.permute.xlu0 7
        %1785 = vperm.xlu0 %1784, %v668
        %v1786 = vpop.permute.xlu0 %1785
        %1788 = vset.pattern.permute.xlu0 7
        %1789 = vperm.xlu0 %1788, %v669
        %v1790 = vpop.permute.xlu0 %1789
        %1792 = vset.pattern.permute.xlu0 7
        %1793 = vperm.xlu0 %1792, %v670
        %v1794 = vpop.permute.xlu0 %1793
        %1796 = vset.pattern.permute.xlu0 7
        %1797 = vperm.xlu0 %1796, %v671
        %v1798 = vpop.permute.xlu0 %1797
        %1800 = vset.pattern.permute.xlu0 7
        %1801 = vperm.xlu0 %1800, %v672
        %v1802 = vpop.permute.xlu0 %1801
        %1804 = vset.pattern.permute.xlu0 7
        %1805 = vperm.xlu0 %1804, %v673
        %v1806 = vpop.permute.xlu0 %1805
        %1808 = vset.pattern.permute.xlu0 7
        %1809 = vperm.xlu0 %1808, %v674
        %v1810 = vpop.permute.xlu0 %1809
        %1812 = vset.pattern.permute.xlu0 7
        %1813 = vperm.xlu0 %1812, %v675
        %v1814 = vpop.permute.xlu0 %1813
        %1816 = vset.pattern.permute.xlu0 7
        %1817 = vperm.xlu0 %1816, %v676
        %v1818 = vpop.permute.xlu0 %1817
        %1820 = vset.pattern.permute.xlu0 7
        %1821 = vperm.xlu0 %1820, %v677
        %v1822 = vpop.permute.xlu0 %1821
        %1824 = vset.pattern.permute.xlu0 7
        %1825 = vperm.xlu0 %1824, %v678
        %v1826 = vpop.permute.xlu0 %1825
        %1828 = vset.pattern.permute.xlu0 7
        %1829 = vperm.xlu0 %1828, %v679
        %v1830 = vpop.permute.xlu0 %1829
        %1832 = vset.pattern.permute.xlu0 7
        %1833 = vperm.xlu0 %1832, %v680
        %v1834 = vpop.permute.xlu0 %1833
        %1836 = vset.pattern.permute.xlu0 7
        %1837 = vperm.xlu0 %1836, %v681
        %v1838 = vpop.permute.xlu0 %1837
        %1840 = vset.pattern.permute.xlu0 7
        %1841 = vperm.xlu0 %1840, %v682
        %v1842 = vpop.permute.xlu0 %1841
        %1844 = vset.pattern.permute.xlu0 7
        %1845 = vperm.xlu0 %1844, %v683
        %v1846 = vpop.permute.xlu0 %1845
        %v1848 = vmul.f32 %v636, %v1786
        %v1849 = vmul.f32 %v637, %v1786
        %v1850 = vmul.f32 %v638, %v1790
        %v1851 = vmul.f32 %v639, %v1790
        %v1852 = vmul.f32 %v640, %v1794
        %v1853 = vmul.f32 %v641, %v1794
        %v1854 = vmul.f32 %v642, %v1798
        %v1855 = vmul.f32 %v643, %v1798
        %v1856 = vmul.f32 %v644, %v1802
        %v1857 = vmul.f32 %v645, %v1802
        %v1858 = vmul.f32 %v646, %v1806
        %v1859 = vmul.f32 %v647, %v1806
        %v1860 = vmul.f32 %v648, %v1810
        %v1861 = vmul.f32 %v649, %v1810
        %v1862 = vmul.f32 %v650, %v1814
        %v1863 = vmul.f32 %v651, %v1814
        %v1864 = vmul.f32 %v652, %v1818
        %v1865 = vmul.f32 %v653, %v1818
        %v1866 = vmul.f32 %v654, %v1822
        %v1867 = vmul.f32 %v655, %v1822
        %v1868 = vmul.f32 %v656, %v1826
        %v1869 = vmul.f32 %v657, %v1826
        %v1870 = vmul.f32 %v658, %v1830
        %v1871 = vmul.f32 %v659, %v1830
        %v1872 = vmul.f32 %v660, %v1834
        %v1873 = vmul.f32 %v661, %v1834
        %v1874 = vmul.f32 %v662, %v1838
        %v1875 = vmul.f32 %v663, %v1838
        %v1876 = vmul.f32 %v664, %v1842
        %v1877 = vmul.f32 %v665, %v1842
        %v1878 = vmul.f32 %v666, %v1846
        %v1879 = vmul.f32 %v667, %v1846
        %v1880 = vadd.f32 %v1752, %v1848
        %v1881 = vadd.f32 %v1753, %v1849
        %v1882 = vadd.f32 %v1754, %v1850
        %v1883 = vadd.f32 %v1755, %v1851
        %v1884 = vadd.f32 %v1756, %v1852
        %v1885 = vadd.f32 %v1757, %v1853
        %v1886 = vadd.f32 %v1758, %v1854
        %v1887 = vadd.f32 %v1759, %v1855
        %v1888 = vadd.f32 %v1760, %v1856
        %v1889 = vadd.f32 %v1761, %v1857
        %v1890 = vadd.f32 %v1762, %v1858
        %v1891 = vadd.f32 %v1763, %v1859
        %v1892 = vadd.f32 %v1764, %v1860
        %v1893 = vadd.f32 %v1765, %v1861
        %v1894 = vadd.f32 %v1766, %v1862
        %v1895 = vadd.f32 %v1767, %v1863
        %v1896 = vadd.f32 %v1768, %v1864
        %v1897 = vadd.f32 %v1769, %v1865
        %v1898 = vadd.f32 %v1770, %v1866
        %v1899 = vadd.f32 %v1771, %v1867
        %v1900 = vadd.f32 %v1772, %v1868
        %v1901 = vadd.f32 %v1773, %v1869
        %v1902 = vadd.f32 %v1774, %v1870
        %v1903 = vadd.f32 %v1775, %v1871
        %v1904 = vadd.f32 %v1776, %v1872
        %v1905 = vadd.f32 %v1777, %v1873
        %v1906 = vadd.f32 %v1778, %v1874
        %v1907 = vadd.f32 %v1779, %v1875
        %v1908 = vadd.f32 %v1780, %v1876
        %v1909 = vadd.f32 %v1781, %v1877
        %v1910 = vadd.f32 %v1782, %v1878
        %v1911 = vadd.f32 %v1783, %v1879
        %1912 = vset.pattern.permute.xlu0 8
        %1913 = vperm.xlu0 %1912, %v668
        %v1914 = vpop.permute.xlu0 %1913
        %1916 = vset.pattern.permute.xlu0 8
        %1917 = vperm.xlu0 %1916, %v669
        %v1918 = vpop.permute.xlu0 %1917
        %1920 = vset.pattern.permute.xlu0 8
        %1921 = vperm.xlu0 %1920, %v670
        %v1922 = vpop.permute.xlu0 %1921
        %1924 = vset.pattern.permute.xlu0 8
        %1925 = vperm.xlu0 %1924, %v671
        %v1926 = vpop.permute.xlu0 %1925
        %1928 = vset.pattern.permute.xlu0 8
        %1929 = vperm.xlu0 %1928, %v672
        %v1930 = vpop.permute.xlu0 %1929
        %1932 = vset.pattern.permute.xlu0 8
        %1933 = vperm.xlu0 %1932, %v673
        %v1934 = vpop.permute.xlu0 %1933
        %1936 = vset.pattern.permute.xlu0 8
        %1937 = vperm.xlu0 %1936, %v674
        %v1938 = vpop.permute.xlu0 %1937
        %1940 = vset.pattern.permute.xlu0 8
        %1941 = vperm.xlu0 %1940, %v675
        %v1942 = vpop.permute.xlu0 %1941
        %1944 = vset.pattern.permute.xlu0 8
        %1945 = vperm.xlu0 %1944, %v676
        %v1946 = vpop.permute.xlu0 %1945
        %1948 = vset.pattern.permute.xlu0 8
        %1949 = vperm.xlu0 %1948, %v677
        %v1950 = vpop.permute.xlu0 %1949
        %1952 = vset.pattern.permute.xlu0 8
        %1953 = vperm.xlu0 %1952, %v678
        %v1954 = vpop.permute.xlu0 %1953
        %1956 = vset.pattern.permute.xlu0 8
        %1957 = vperm.xlu0 %1956, %v679
        %v1958 = vpop.permute.xlu0 %1957
        %1960 = vset.pattern.permute.xlu0 8
        %1961 = vperm.xlu0 %1960, %v680
        %v1962 = vpop.permute.xlu0 %1961
        %1964 = vset.pattern.permute.xlu0 8
        %1965 = vperm.xlu0 %1964, %v681
        %v1966 = vpop.permute.xlu0 %1965
        %1968 = vset.pattern.permute.xlu0 8
        %1969 = vperm.xlu0 %1968, %v682
        %v1970 = vpop.permute.xlu0 %1969
        %1972 = vset.pattern.permute.xlu0 8
        %1973 = vperm.xlu0 %1972, %v683
        %v1974 = vpop.permute.xlu0 %1973
        %v1976 = vmul.f32 %v892, %v1914
        %v1977 = vmul.f32 %v893, %v1914
        %v1978 = vmul.f32 %v894, %v1918
        %v1979 = vmul.f32 %v895, %v1918
        %v1980 = vmul.f32 %v896, %v1922
        %v1981 = vmul.f32 %v897, %v1922
        %v1982 = vmul.f32 %v898, %v1926
        %v1983 = vmul.f32 %v899, %v1926
        %v1984 = vmul.f32 %v900, %v1930
        %v1985 = vmul.f32 %v901, %v1930
        %v1986 = vmul.f32 %v902, %v1934
        %v1987 = vmul.f32 %v903, %v1934
        %v1988 = vmul.f32 %v904, %v1938
        %v1989 = vmul.f32 %v905, %v1938
        %v1990 = vmul.f32 %v906, %v1942
        %v1991 = vmul.f32 %v907, %v1942
        %v1992 = vmul.f32 %v908, %v1946
        %v1993 = vmul.f32 %v909, %v1946
        %v1994 = vmul.f32 %v910, %v1950
        %v1995 = vmul.f32 %v911, %v1950
        %v1996 = vmul.f32 %v912, %v1954
        %v1997 = vmul.f32 %v913, %v1954
        %v1998 = vmul.f32 %v914, %v1958
        %v1999 = vmul.f32 %v915, %v1958
        %v2000 = vmul.f32 %v916, %v1962
        %v2001 = vmul.f32 %v917, %v1962
        %v2002 = vmul.f32 %v918, %v1966
        %v2003 = vmul.f32 %v919, %v1966
        %v2004 = vmul.f32 %v920, %v1970
        %v2005 = vmul.f32 %v921, %v1970
        %v2006 = vmul.f32 %v922, %v1974
        %v2007 = vmul.f32 %v923, %v1974
        %v2008 = vadd.f32 %v1880, %v1976
        %v2009 = vadd.f32 %v1881, %v1977
        %v2010 = vadd.f32 %v1882, %v1978
        %v2011 = vadd.f32 %v1883, %v1979
        %v2012 = vadd.f32 %v1884, %v1980
        %v2013 = vadd.f32 %v1885, %v1981
        %v2014 = vadd.f32 %v1886, %v1982
        %v2015 = vadd.f32 %v1887, %v1983
        %v2016 = vadd.f32 %v1888, %v1984
        %v2017 = vadd.f32 %v1889, %v1985
        %v2018 = vadd.f32 %v1890, %v1986
        %v2019 = vadd.f32 %v1891, %v1987
        %v2020 = vadd.f32 %v1892, %v1988
        %v2021 = vadd.f32 %v1893, %v1989
        %v2022 = vadd.f32 %v1894, %v1990
        %v2023 = vadd.f32 %v1895, %v1991
        %v2024 = vadd.f32 %v1896, %v1992
        %v2025 = vadd.f32 %v1897, %v1993
        %v2026 = vadd.f32 %v1898, %v1994
        %v2027 = vadd.f32 %v1899, %v1995
        %v2028 = vadd.f32 %v1900, %v1996
        %v2029 = vadd.f32 %v1901, %v1997
        %v2030 = vadd.f32 %v1902, %v1998
        %v2031 = vadd.f32 %v1903, %v1999
        %v2032 = vadd.f32 %v1904, %v2000
        %v2033 = vadd.f32 %v1905, %v2001
        %v2034 = vadd.f32 %v1906, %v2002
        %v2035 = vadd.f32 %v1907, %v2003
        %v2036 = vadd.f32 %v1908, %v2004
        %v2037 = vadd.f32 %v1909, %v2005
        %v2038 = vadd.f32 %v1910, %v2006
        %v2039 = vadd.f32 %v1911, %v2007
        %vm2040 = vcmp.eq.s32.totalorder %v341, 0
        %2041 = vrot.lane.b32.xlu0 %v1304, 112
        %v2042 = vpop.permute.xlu0 %2041
        %2043 = vrot.lane.b32.xlu0 %v1306, 112
        %v2044 = vpop.permute.xlu0 %2043
        %2045 = vrot.lane.b32.xlu0 %v1308, 112
        %v2046 = vpop.permute.xlu0 %2045
        %2047 = vrot.lane.b32.xlu0 %v1310, 112
        %v2048 = vpop.permute.xlu0 %2047
        %2049 = vrot.lane.b32.xlu0 %v1312, 112
        %v2050 = vpop.permute.xlu0 %2049
        %2051 = vrot.lane.b32.xlu0 %v1314, 112
        %v2052 = vpop.permute.xlu0 %2051
        %2053 = vrot.lane.b32.xlu0 %v1316, 112
        %v2054 = vpop.permute.xlu0 %2053
        %2055 = vrot.lane.b32.xlu0 %v1318, 112
        %v2056 = vpop.permute.xlu0 %2055
        %2057 = vrot.lane.b32.xlu0 %v1320, 112
        %v2058 = vpop.permute.xlu0 %2057
        %2059 = vrot.lane.b32.xlu0 %v1322, 112
        %v2060 = vpop.permute.xlu0 %2059
        %2061 = vrot.lane.b32.xlu0 %v1324, 112
        %v2062 = vpop.permute.xlu0 %2061
        %2063 = vrot.lane.b32.xlu0 %v1326, 112
        %v2064 = vpop.permute.xlu0 %2063
        %2065 = vrot.lane.b32.xlu0 %v1328, 112
        %v2066 = vpop.permute.xlu0 %2065
        %2067 = vrot.lane.b32.xlu0 %v1330, 112
        %v2068 = vpop.permute.xlu0 %2067
        %2069 = vrot.lane.b32.xlu0 %v1332, 112
        %v2070 = vpop.permute.xlu0 %2069
        %2071 = vrot.lane.b32.xlu0 %v1334, 112
        %v2072 = vpop.permute.xlu0 %2071
        %2073 = vrot.lane.b32.xlu0 %v1305, 112
        %v2074 = vpop.permute.xlu0 %2073
        %2075 = vrot.lane.b32.xlu0 %v1307, 112
        %v2076 = vpop.permute.xlu0 %2075
        %2077 = vrot.lane.b32.xlu0 %v1309, 112
        %v2078 = vpop.permute.xlu0 %2077
        %2079 = vrot.lane.b32.xlu0 %v1311, 112
        %v2080 = vpop.permute.xlu0 %2079
        %2081 = vrot.lane.b32.xlu0 %v1313, 112
        %v2082 = vpop.permute.xlu0 %2081
        %2083 = vrot.lane.b32.xlu0 %v1315, 112
        %v2084 = vpop.permute.xlu0 %2083
        %2085 = vrot.lane.b32.xlu0 %v1317, 112
        %v2086 = vpop.permute.xlu0 %2085
        %2087 = vrot.lane.b32.xlu0 %v1319, 112
        %v2088 = vpop.permute.xlu0 %2087
        %2089 = vrot.lane.b32.xlu0 %v1321, 112
        %v2090 = vpop.permute.xlu0 %2089
        %2091 = vrot.lane.b32.xlu0 %v1323, 112
        %v2092 = vpop.permute.xlu0 %2091
        %2093 = vrot.lane.b32.xlu0 %v1325, 112
        %v2094 = vpop.permute.xlu0 %2093
        %2095 = vrot.lane.b32.xlu0 %v1327, 112
        %v2096 = vpop.permute.xlu0 %2095
        %2097 = vrot.lane.b32.xlu0 %v1329, 112
        %v2098 = vpop.permute.xlu0 %2097
        %2099 = vrot.lane.b32.xlu0 %v1331, 112
        %v2100 = vpop.permute.xlu0 %2099
        %2101 = vrot.lane.b32.xlu0 %v1333, 112
        %v2102 = vpop.permute.xlu0 %2101
        %2103 = vrot.lane.b32.xlu0 %v1335, 112
        %v2104 = vpop.permute.xlu0 %2103
        %vm2105 = vcmp.lt.s32.totalorder %v749, 112
        %v2106 = vsel %vm2105, %v2042, %v2074
        %v2107 = vsel %vm2105, %v2044, %v2076
        %v2108 = vsel %vm2105, %v2046, %v2078
        %v2109 = vsel %vm2105, %v2048, %v2080
        %v2110 = vsel %vm2105, %v2050, %v2082
        %v2111 = vsel %vm2105, %v2052, %v2084
        %v2112 = vsel %vm2105, %v2054, %v2086
        %v2113 = vsel %vm2105, %v2056, %v2088
        %v2114 = vsel %vm2105, %v2058, %v2090
        %v2115 = vsel %vm2105, %v2060, %v2092
        %v2116 = vsel %vm2105, %v2062, %v2094
        %v2117 = vsel %vm2105, %v2064, %v2096
        %v2118 = vsel %vm2105, %v2066, %v2098
        %v2119 = vsel %vm2105, %v2068, %v2100
        %v2120 = vsel %vm2105, %v2070, %v2102
        %v2121 = vsel %vm2105, %v2072, %v2104
        %v2122 = vsel %vm2105, %v2074, %v2042
        %v2123 = vsel %vm2105, %v2076, %v2044
        %v2124 = vsel %vm2105, %v2078, %v2046
        %v2125 = vsel %vm2105, %v2080, %v2048
        %v2126 = vsel %vm2105, %v2082, %v2050
        %v2127 = vsel %vm2105, %v2084, %v2052
        %v2128 = vsel %vm2105, %v2086, %v2054
        %v2129 = vsel %vm2105, %v2088, %v2056
        %v2130 = vsel %vm2105, %v2090, %v2058
        %v2131 = vsel %vm2105, %v2092, %v2060
        %v2132 = vsel %vm2105, %v2094, %v2062
        %v2133 = vsel %vm2105, %v2096, %v2064
        %v2134 = vsel %vm2105, %v2098, %v2066
        %v2135 = vsel %vm2105, %v2100, %v2068
        %v2136 = vsel %vm2105, %v2102, %v2070
        %v2137 = vsel %vm2105, %v2104, %v2072
        %2138 = vrot.lane.b32.xlu0 %v1304, 16
        %v2139 = vpop.permute.xlu0 %2138
        %2140 = vrot.lane.b32.xlu0 %v1306, 16
        %v2141 = vpop.permute.xlu0 %2140
        %2142 = vrot.lane.b32.xlu0 %v1308, 16
        %v2143 = vpop.permute.xlu0 %2142
        %2144 = vrot.lane.b32.xlu0 %v1310, 16
        %v2145 = vpop.permute.xlu0 %2144
        %2146 = vrot.lane.b32.xlu0 %v1312, 16
        %v2147 = vpop.permute.xlu0 %2146
        %2148 = vrot.lane.b32.xlu0 %v1314, 16
        %v2149 = vpop.permute.xlu0 %2148
        %2150 = vrot.lane.b32.xlu0 %v1316, 16
        %v2151 = vpop.permute.xlu0 %2150
        %2152 = vrot.lane.b32.xlu0 %v1318, 16
        %v2153 = vpop.permute.xlu0 %2152
        %2154 = vrot.lane.b32.xlu0 %v1320, 16
        %v2155 = vpop.permute.xlu0 %2154
        %2156 = vrot.lane.b32.xlu0 %v1322, 16
        %v2157 = vpop.permute.xlu0 %2156
        %2158 = vrot.lane.b32.xlu0 %v1324, 16
        %v2159 = vpop.permute.xlu0 %2158
        %2160 = vrot.lane.b32.xlu0 %v1326, 16
        %v2161 = vpop.permute.xlu0 %2160
        %2162 = vrot.lane.b32.xlu0 %v1328, 16
        %v2163 = vpop.permute.xlu0 %2162
        %2164 = vrot.lane.b32.xlu0 %v1330, 16
        %v2165 = vpop.permute.xlu0 %2164
        %2166 = vrot.lane.b32.xlu0 %v1332, 16
        %v2167 = vpop.permute.xlu0 %2166
        %2168 = vrot.lane.b32.xlu0 %v1334, 16
        %v2169 = vpop.permute.xlu0 %2168
        %2170 = vrot.lane.b32.xlu0 %v1305, 16
        %v2171 = vpop.permute.xlu0 %2170
        %2172 = vrot.lane.b32.xlu0 %v1307, 16
        %v2173 = vpop.permute.xlu0 %2172
        %2174 = vrot.lane.b32.xlu0 %v1309, 16
        %v2175 = vpop.permute.xlu0 %2174
        %2176 = vrot.lane.b32.xlu0 %v1311, 16
        %v2177 = vpop.permute.xlu0 %2176
        %2178 = vrot.lane.b32.xlu0 %v1313, 16
        %v2179 = vpop.permute.xlu0 %2178
        %2180 = vrot.lane.b32.xlu0 %v1315, 16
        %v2181 = vpop.permute.xlu0 %2180
        %2182 = vrot.lane.b32.xlu0 %v1317, 16
        %v2183 = vpop.permute.xlu0 %2182
        %2184 = vrot.lane.b32.xlu0 %v1319, 16
        %v2185 = vpop.permute.xlu0 %2184
        %2186 = vrot.lane.b32.xlu0 %v1321, 16
        %v2187 = vpop.permute.xlu0 %2186
        %2188 = vrot.lane.b32.xlu0 %v1323, 16
        %v2189 = vpop.permute.xlu0 %2188
        %2190 = vrot.lane.b32.xlu0 %v1325, 16
        %v2191 = vpop.permute.xlu0 %2190
        %2192 = vrot.lane.b32.xlu0 %v1327, 16
        %v2193 = vpop.permute.xlu0 %2192
        %2194 = vrot.lane.b32.xlu0 %v1329, 16
        %v2195 = vpop.permute.xlu0 %2194
        %2196 = vrot.lane.b32.xlu0 %v1331, 16
        %v2197 = vpop.permute.xlu0 %2196
        %2198 = vrot.lane.b32.xlu0 %v1333, 16
        %v2199 = vpop.permute.xlu0 %2198
        %2200 = vrot.lane.b32.xlu0 %v1335, 16
        %v2201 = vpop.permute.xlu0 %2200
        %vm2202 = vcmp.lt.s32.totalorder %v749, 16
        %v2203 = vsel %vm2202, %v2139, %v2171
        %v2204 = vsel %vm2202, %v2141, %v2173
        %v2205 = vsel %vm2202, %v2143, %v2175
        %v2206 = vsel %vm2202, %v2145, %v2177
        %v2207 = vsel %vm2202, %v2147, %v2179
        %v2208 = vsel %vm2202, %v2149, %v2181
        %v2209 = vsel %vm2202, %v2151, %v2183
        %v2210 = vsel %vm2202, %v2153, %v2185
        %v2211 = vsel %vm2202, %v2155, %v2187
        %v2212 = vsel %vm2202, %v2157, %v2189
        %v2213 = vsel %vm2202, %v2159, %v2191
        %v2214 = vsel %vm2202, %v2161, %v2193
        %v2215 = vsel %vm2202, %v2163, %v2195
        %v2216 = vsel %vm2202, %v2165, %v2197
        %v2217 = vsel %vm2202, %v2167, %v2199
        %v2218 = vsel %vm2202, %v2169, %v2201
        %v2219 = vsel %vm2202, %v2171, %v2139
        %v2220 = vsel %vm2202, %v2173, %v2141
        %v2221 = vsel %vm2202, %v2175, %v2143
        %v2222 = vsel %vm2202, %v2177, %v2145
        %v2223 = vsel %vm2202, %v2179, %v2147
        %v2224 = vsel %vm2202, %v2181, %v2149
        %v2225 = vsel %vm2202, %v2183, %v2151
        %v2226 = vsel %vm2202, %v2185, %v2153
        %v2227 = vsel %vm2202, %v2187, %v2155
        %v2228 = vsel %vm2202, %v2189, %v2157
        %v2229 = vsel %vm2202, %v2191, %v2159
        %v2230 = vsel %vm2202, %v2193, %v2161
        %v2231 = vsel %vm2202, %v2195, %v2163
        %v2232 = vsel %vm2202, %v2197, %v2165
        %v2233 = vsel %vm2202, %v2199, %v2167
        %v2234 = vsel %vm2202, %v2201, %v2169
        %v2235 = vsel %vm2040, 1, 0
        %v2236 = vlaneseq
        %v2237 = vshrl.u32 %v2236, 7
        %v2238 = vsub.s32 0, %v2237
        %v2239 = vrot.slane %v2235, %v2238
        %v2240 = vlaneseq
        %v2241 = vshrl.u32 %v2240, 7
        %v2242 = vsub.s32 1, %v2241
        %v2243 = vrot.slane %v2235, %v2242
        %vm2244 = vcmp.eq.s32.totalorder %v2239, 1
        %vm2245 = vcmp.eq.s32.totalorder %v2243, 1
        %v2246 = vsel %vm2244, %v2106, %v2219
        %v2247 = vsel %vm2245, %v2122, %v2203
        %v2248 = vsel %vm2244, %v2107, %v2220
        %v2249 = vsel %vm2245, %v2123, %v2204
        %v2250 = vsel %vm2244, %v2108, %v2221
        %v2251 = vsel %vm2245, %v2124, %v2205
        %v2252 = vsel %vm2244, %v2109, %v2222
        %v2253 = vsel %vm2245, %v2125, %v2206
        %v2254 = vsel %vm2244, %v2110, %v2223
        %v2255 = vsel %vm2245, %v2126, %v2207
        %v2256 = vsel %vm2244, %v2111, %v2224
        %v2257 = vsel %vm2245, %v2127, %v2208
        %v2258 = vsel %vm2244, %v2112, %v2225
        %v2259 = vsel %vm2245, %v2128, %v2209
        %v2260 = vsel %vm2244, %v2113, %v2226
        %v2261 = vsel %vm2245, %v2129, %v2210
        %v2262 = vsel %vm2244, %v2114, %v2227
        %v2263 = vsel %vm2245, %v2130, %v2211
        %v2264 = vsel %vm2244, %v2115, %v2228
        %v2265 = vsel %vm2245, %v2131, %v2212
        %v2266 = vsel %vm2244, %v2116, %v2229
        %v2267 = vsel %vm2245, %v2132, %v2213
        %v2268 = vsel %vm2244, %v2117, %v2230
        %v2269 = vsel %vm2245, %v2133, %v2214
        %v2270 = vsel %vm2244, %v2118, %v2231
        %v2271 = vsel %vm2245, %v2134, %v2215
        %v2272 = vsel %vm2244, %v2119, %v2232
        %v2273 = vsel %vm2245, %v2135, %v2216
        %v2274 = vsel %vm2244, %v2120, %v2233
        %v2275 = vsel %vm2245, %v2136, %v2217
        %v2276 = vsel %vm2244, %v2121, %v2234
        %v2277 = vsel %vm2245, %v2137, %v2218
        %vm2278 = vcmp.eq.s32.totalorder %v341, 15
        %2279 = vrot.lane.b32.xlu0 %v2008, 16
        %v2280 = vpop.permute.xlu0 %2279
        %2281 = vrot.lane.b32.xlu0 %v2010, 16
        %v2282 = vpop.permute.xlu0 %2281
        %2283 = vrot.lane.b32.xlu0 %v2012, 16
        %v2284 = vpop.permute.xlu0 %2283
        %2285 = vrot.lane.b32.xlu0 %v2014, 16
        %v2286 = vpop.permute.xlu0 %2285
        %2287 = vrot.lane.b32.xlu0 %v2016, 16
        %v2288 = vpop.permute.xlu0 %2287
        %2289 = vrot.lane.b32.xlu0 %v2018, 16
        %v2290 = vpop.permute.xlu0 %2289
        %2291 = vrot.lane.b32.xlu0 %v2020, 16
        %v2292 = vpop.permute.xlu0 %2291
        %2293 = vrot.lane.b32.xlu0 %v2022, 16
        %v2294 = vpop.permute.xlu0 %2293
        %2295 = vrot.lane.b32.xlu0 %v2024, 16
        %v2296 = vpop.permute.xlu0 %2295
        %2297 = vrot.lane.b32.xlu0 %v2026, 16
        %v2298 = vpop.permute.xlu0 %2297
        %2299 = vrot.lane.b32.xlu0 %v2028, 16
        %v2300 = vpop.permute.xlu0 %2299
        %2301 = vrot.lane.b32.xlu0 %v2030, 16
        %v2302 = vpop.permute.xlu0 %2301
        %2303 = vrot.lane.b32.xlu0 %v2032, 16
        %v2304 = vpop.permute.xlu0 %2303
        %2305 = vrot.lane.b32.xlu0 %v2034, 16
        %v2306 = vpop.permute.xlu0 %2305
        %2307 = vrot.lane.b32.xlu0 %v2036, 16
        %v2308 = vpop.permute.xlu0 %2307
        %2309 = vrot.lane.b32.xlu0 %v2038, 16
        %v2310 = vpop.permute.xlu0 %2309
        %2311 = vrot.lane.b32.xlu0 %v2009, 16
        %v2312 = vpop.permute.xlu0 %2311
        %2313 = vrot.lane.b32.xlu0 %v2011, 16
        %v2314 = vpop.permute.xlu0 %2313
        %2315 = vrot.lane.b32.xlu0 %v2013, 16
        %v2316 = vpop.permute.xlu0 %2315
        %2317 = vrot.lane.b32.xlu0 %v2015, 16
        %v2318 = vpop.permute.xlu0 %2317
        %2319 = vrot.lane.b32.xlu0 %v2017, 16
        %v2320 = vpop.permute.xlu0 %2319
        %2321 = vrot.lane.b32.xlu0 %v2019, 16
        %v2322 = vpop.permute.xlu0 %2321
        %2323 = vrot.lane.b32.xlu0 %v2021, 16
        %v2324 = vpop.permute.xlu0 %2323
        %2325 = vrot.lane.b32.xlu0 %v2023, 16
        %v2326 = vpop.permute.xlu0 %2325
        %2327 = vrot.lane.b32.xlu0 %v2025, 16
        %v2328 = vpop.permute.xlu0 %2327
        %2329 = vrot.lane.b32.xlu0 %v2027, 16
        %v2330 = vpop.permute.xlu0 %2329
        %2331 = vrot.lane.b32.xlu0 %v2029, 16
        %v2332 = vpop.permute.xlu0 %2331
        %2333 = vrot.lane.b32.xlu0 %v2031, 16
        %v2334 = vpop.permute.xlu0 %2333
        %2335 = vrot.lane.b32.xlu0 %v2033, 16
        %v2336 = vpop.permute.xlu0 %2335
        %2337 = vrot.lane.b32.xlu0 %v2035, 16
        %v2338 = vpop.permute.xlu0 %2337
        %2339 = vrot.lane.b32.xlu0 %v2037, 16
        %v2340 = vpop.permute.xlu0 %2339
        %2341 = vrot.lane.b32.xlu0 %v2039, 16
        %v2342 = vpop.permute.xlu0 %2341
        %v2343 = vsel %vm2202, %v2280, %v2312
        %v2344 = vsel %vm2202, %v2282, %v2314
        %v2345 = vsel %vm2202, %v2284, %v2316
        %v2346 = vsel %vm2202, %v2286, %v2318
        %v2347 = vsel %vm2202, %v2288, %v2320
        %v2348 = vsel %vm2202, %v2290, %v2322
        %v2349 = vsel %vm2202, %v2292, %v2324
        %v2350 = vsel %vm2202, %v2294, %v2326
        %v2351 = vsel %vm2202, %v2296, %v2328
        %v2352 = vsel %vm2202, %v2298, %v2330
        %v2353 = vsel %vm2202, %v2300, %v2332
        %v2354 = vsel %vm2202, %v2302, %v2334
        %v2355 = vsel %vm2202, %v2304, %v2336
        %v2356 = vsel %vm2202, %v2306, %v2338
        %v2357 = vsel %vm2202, %v2308, %v2340
        %v2358 = vsel %vm2202, %v2310, %v2342
        %v2359 = vsel %vm2202, %v2312, %v2280
        %v2360 = vsel %vm2202, %v2314, %v2282
        %v2361 = vsel %vm2202, %v2316, %v2284
        %v2362 = vsel %vm2202, %v2318, %v2286
        %v2363 = vsel %vm2202, %v2320, %v2288
        %v2364 = vsel %vm2202, %v2322, %v2290
        %v2365 = vsel %vm2202, %v2324, %v2292
        %v2366 = vsel %vm2202, %v2326, %v2294
        %v2367 = vsel %vm2202, %v2328, %v2296
        %v2368 = vsel %vm2202, %v2330, %v2298
        %v2369 = vsel %vm2202, %v2332, %v2300
        %v2370 = vsel %vm2202, %v2334, %v2302
        %v2371 = vsel %vm2202, %v2336, %v2304
        %v2372 = vsel %vm2202, %v2338, %v2306
        %v2373 = vsel %vm2202, %v2340, %v2308
        %v2374 = vsel %vm2202, %v2342, %v2310
        %2375 = vrot.lane.b32.xlu0 %v2008, 112
        %v2376 = vpop.permute.xlu0 %2375
        %2377 = vrot.lane.b32.xlu0 %v2010, 112
        %v2378 = vpop.permute.xlu0 %2377
        %2379 = vrot.lane.b32.xlu0 %v2012, 112
        %v2380 = vpop.permute.xlu0 %2379
        %2381 = vrot.lane.b32.xlu0 %v2014, 112
        %v2382 = vpop.permute.xlu0 %2381
        %2383 = vrot.lane.b32.xlu0 %v2016, 112
        %v2384 = vpop.permute.xlu0 %2383
        %2385 = vrot.lane.b32.xlu0 %v2018, 112
        %v2386 = vpop.permute.xlu0 %2385
        %2387 = vrot.lane.b32.xlu0 %v2020, 112
        %v2388 = vpop.permute.xlu0 %2387
        %2389 = vrot.lane.b32.xlu0 %v2022, 112
        %v2390 = vpop.permute.xlu0 %2389
        %2391 = vrot.lane.b32.xlu0 %v2024, 112
        %v2392 = vpop.permute.xlu0 %2391
        %2393 = vrot.lane.b32.xlu0 %v2026, 112
        %v2394 = vpop.permute.xlu0 %2393
        %2395 = vrot.lane.b32.xlu0 %v2028, 112
        %v2396 = vpop.permute.xlu0 %2395
        %2397 = vrot.lane.b32.xlu0 %v2030, 112
        %v2398 = vpop.permute.xlu0 %2397
        %2399 = vrot.lane.b32.xlu0 %v2032, 112
        %v2400 = vpop.permute.xlu0 %2399
        %2401 = vrot.lane.b32.xlu0 %v2034, 112
        %v2402 = vpop.permute.xlu0 %2401
        %2403 = vrot.lane.b32.xlu0 %v2036, 112
        %v2404 = vpop.permute.xlu0 %2403
        %2405 = vrot.lane.b32.xlu0 %v2038, 112
        %v2406 = vpop.permute.xlu0 %2405
        %2407 = vrot.lane.b32.xlu0 %v2009, 112
        %v2408 = vpop.permute.xlu0 %2407
        %2409 = vrot.lane.b32.xlu0 %v2011, 112
        %v2410 = vpop.permute.xlu0 %2409
        %2411 = vrot.lane.b32.xlu0 %v2013, 112
        %v2412 = vpop.permute.xlu0 %2411
        %2413 = vrot.lane.b32.xlu0 %v2015, 112
        %v2414 = vpop.permute.xlu0 %2413
        %2415 = vrot.lane.b32.xlu0 %v2017, 112
        %v2416 = vpop.permute.xlu0 %2415
        %2417 = vrot.lane.b32.xlu0 %v2019, 112
        %v2418 = vpop.permute.xlu0 %2417
        %2419 = vrot.lane.b32.xlu0 %v2021, 112
        %v2420 = vpop.permute.xlu0 %2419
        %2421 = vrot.lane.b32.xlu0 %v2023, 112
        %v2422 = vpop.permute.xlu0 %2421
        %2423 = vrot.lane.b32.xlu0 %v2025, 112
        %v2424 = vpop.permute.xlu0 %2423
        %2425 = vrot.lane.b32.xlu0 %v2027, 112
        %v2426 = vpop.permute.xlu0 %2425
        %2427 = vrot.lane.b32.xlu0 %v2029, 112
        %v2428 = vpop.permute.xlu0 %2427
        %2429 = vrot.lane.b32.xlu0 %v2031, 112
        %v2430 = vpop.permute.xlu0 %2429
        %2431 = vrot.lane.b32.xlu0 %v2033, 112
        %v2432 = vpop.permute.xlu0 %2431
        %2433 = vrot.lane.b32.xlu0 %v2035, 112
        %v2434 = vpop.permute.xlu0 %2433
        %2435 = vrot.lane.b32.xlu0 %v2037, 112
        %v2436 = vpop.permute.xlu0 %2435
        %2437 = vrot.lane.b32.xlu0 %v2039, 112
        %v2438 = vpop.permute.xlu0 %2437
        %v2439 = vsel %vm2105, %v2376, %v2408
        %v2440 = vsel %vm2105, %v2378, %v2410
        %v2441 = vsel %vm2105, %v2380, %v2412
        %v2442 = vsel %vm2105, %v2382, %v2414
        %v2443 = vsel %vm2105, %v2384, %v2416
        %v2444 = vsel %vm2105, %v2386, %v2418
        %v2445 = vsel %vm2105, %v2388, %v2420
        %v2446 = vsel %vm2105, %v2390, %v2422
        %v2447 = vsel %vm2105, %v2392, %v2424
        %v2448 = vsel %vm2105, %v2394, %v2426
        %v2449 = vsel %vm2105, %v2396, %v2428
        %v2450 = vsel %vm2105, %v2398, %v2430
        %v2451 = vsel %vm2105, %v2400, %v2432
        %v2452 = vsel %vm2105, %v2402, %v2434
        %v2453 = vsel %vm2105, %v2404, %v2436
        %v2454 = vsel %vm2105, %v2406, %v2438
        %v2455 = vsel %vm2105, %v2408, %v2376
        %v2456 = vsel %vm2105, %v2410, %v2378
        %v2457 = vsel %vm2105, %v2412, %v2380
        %v2458 = vsel %vm2105, %v2414, %v2382
        %v2459 = vsel %vm2105, %v2416, %v2384
        %v2460 = vsel %vm2105, %v2418, %v2386
        %v2461 = vsel %vm2105, %v2420, %v2388
        %v2462 = vsel %vm2105, %v2422, %v2390
        %v2463 = vsel %vm2105, %v2424, %v2392
        %v2464 = vsel %vm2105, %v2426, %v2394
        %v2465 = vsel %vm2105, %v2428, %v2396
        %v2466 = vsel %vm2105, %v2430, %v2398
        %v2467 = vsel %vm2105, %v2432, %v2400
        %v2468 = vsel %vm2105, %v2434, %v2402
        %v2469 = vsel %vm2105, %v2436, %v2404
        %v2470 = vsel %vm2105, %v2438, %v2406
        %v2471 = vsel %vm2278, 1, 0
        %v2472 = vlaneseq
        %v2473 = vshrl.u32 %v2472, 7
        %v2474 = vsub.s32 0, %v2473
        %v2475 = vrot.slane %v2471, %v2474
        %v2476 = vlaneseq
        %v2477 = vshrl.u32 %v2476, 7
        %v2478 = vsub.s32 1, %v2477
        %v2479 = vrot.slane %v2471, %v2478
        %vm2480 = vcmp.eq.s32.totalorder %v2475, 1
        %vm2481 = vcmp.eq.s32.totalorder %v2479, 1
        %v2482 = vsel %vm2480, %v2359, %v2439
        %v2483 = vsel %vm2481, %v2343, %v2455
        %v2484 = vsel %vm2480, %v2360, %v2440
        %v2485 = vsel %vm2481, %v2344, %v2456
        %v2486 = vsel %vm2480, %v2361, %v2441
        %v2487 = vsel %vm2481, %v2345, %v2457
        %v2488 = vsel %vm2480, %v2362, %v2442
        %v2489 = vsel %vm2481, %v2346, %v2458
        %v2490 = vsel %vm2480, %v2363, %v2443
        %v2491 = vsel %vm2481, %v2347, %v2459
        %v2492 = vsel %vm2480, %v2364, %v2444
        %v2493 = vsel %vm2481, %v2348, %v2460
        %v2494 = vsel %vm2480, %v2365, %v2445
        %v2495 = vsel %vm2481, %v2349, %v2461
        %v2496 = vsel %vm2480, %v2366, %v2446
        %v2497 = vsel %vm2481, %v2350, %v2462
        %v2498 = vsel %vm2480, %v2367, %v2447
        %v2499 = vsel %vm2481, %v2351, %v2463
        %v2500 = vsel %vm2480, %v2368, %v2448
        %v2501 = vsel %vm2481, %v2352, %v2464
        %v2502 = vsel %vm2480, %v2369, %v2449
        %v2503 = vsel %vm2481, %v2353, %v2465
        %v2504 = vsel %vm2480, %v2370, %v2450
        %v2505 = vsel %vm2481, %v2354, %v2466
        %v2506 = vsel %vm2480, %v2371, %v2451
        %v2507 = vsel %vm2481, %v2355, %v2467
        %v2508 = vsel %vm2480, %v2372, %v2452
        %v2509 = vsel %vm2481, %v2356, %v2468
        %v2510 = vsel %vm2480, %v2373, %v2453
        %v2511 = vsel %vm2481, %v2357, %v2469
        %v2512 = vsel %vm2480, %v2374, %v2454
        %v2513 = vsel %vm2481, %v2358, %v2470
        %v2514 = vadd.f32 %v1656, %v2246
        %v2515 = vadd.f32 %v1657, %v2247
        %v2516 = vadd.f32 %v1658, %v2248
        %v2517 = vadd.f32 %v1659, %v2249
        %v2518 = vadd.f32 %v1660, %v2250
        %v2519 = vadd.f32 %v1661, %v2251
        %v2520 = vadd.f32 %v1662, %v2252
        %v2521 = vadd.f32 %v1663, %v2253
        %v2522 = vadd.f32 %v1664, %v2254
        %v2523 = vadd.f32 %v1665, %v2255
        %v2524 = vadd.f32 %v1666, %v2256
        %v2525 = vadd.f32 %v1667, %v2257
        %v2526 = vadd.f32 %v1668, %v2258
        %v2527 = vadd.f32 %v1669, %v2259
        %v2528 = vadd.f32 %v1670, %v2260
        %v2529 = vadd.f32 %v1671, %v2261
        %v2530 = vadd.f32 %v1672, %v2262
        %v2531 = vadd.f32 %v1673, %v2263
        %v2532 = vadd.f32 %v1674, %v2264
        %v2533 = vadd.f32 %v1675, %v2265
        %v2534 = vadd.f32 %v1676, %v2266
        %v2535 = vadd.f32 %v1677, %v2267
        %v2536 = vadd.f32 %v1678, %v2268
        %v2537 = vadd.f32 %v1679, %v2269
        %v2538 = vadd.f32 %v1680, %v2270
        %v2539 = vadd.f32 %v1681, %v2271
        %v2540 = vadd.f32 %v1682, %v2272
        %v2541 = vadd.f32 %v1683, %v2273
        %v2542 = vadd.f32 %v1684, %v2274
        %v2543 = vadd.f32 %v1685, %v2275
        %v2544 = vadd.f32 %v1686, %v2276
        %v2545 = vadd.f32 %v1687, %v2277
        %v2546 = vadd.f32 %v2514, %v2482
        %v2547 = vadd.f32 %v2515, %v2483
        %v2548 = vadd.f32 %v2516, %v2484
        %v2549 = vadd.f32 %v2517, %v2485
        %v2550 = vadd.f32 %v2518, %v2486
        %v2551 = vadd.f32 %v2519, %v2487
        %v2552 = vadd.f32 %v2520, %v2488
        %v2553 = vadd.f32 %v2521, %v2489
        %v2554 = vadd.f32 %v2522, %v2490
        %v2555 = vadd.f32 %v2523, %v2491
        %v2556 = vadd.f32 %v2524, %v2492
        %v2557 = vadd.f32 %v2525, %v2493
        %v2558 = vadd.f32 %v2526, %v2494
        %v2559 = vadd.f32 %v2527, %v2495
        %v2560 = vadd.f32 %v2528, %v2496
        %v2561 = vadd.f32 %v2529, %v2497
        %v2562 = vadd.f32 %v2530, %v2498
        %v2563 = vadd.f32 %v2531, %v2499
        %v2564 = vadd.f32 %v2532, %v2500
        %v2565 = vadd.f32 %v2533, %v2501
        %v2566 = vadd.f32 %v2534, %v2502
        %v2567 = vadd.f32 %v2535, %v2503
        %v2568 = vadd.f32 %v2536, %v2504
        %v2569 = vadd.f32 %v2537, %v2505
        %v2570 = vadd.f32 %v2538, %v2506
        %v2571 = vadd.f32 %v2539, %v2507
        %v2572 = vadd.f32 %v2540, %v2508
        %v2573 = vadd.f32 %v2541, %v2509
        %v2574 = vadd.f32 %v2542, %v2510
        %v2575 = vadd.f32 %v2543, %v2511
        %v2576 = vadd.f32 %v2544, %v2512
        %v2577 = vadd.f32 %v2545, %v2513
        %v2578 = vld [vmem:[%s6] sm:$0xff]
        %v2579 = vld [vmem:[%s6 + $0x8] sm:$0xff]
        %v2580 = vld [vmem:[%s6 + $0x10] sm:$0xff]
        %v2581 = vld [vmem:[%s6 + $0x18] sm:$0xff]
        %v2582 = vld [vmem:[%s6 + $0x20] sm:$0xff]
        %v2583 = vld [vmem:[%s6 + $0x28] sm:$0xff]
        %v2584 = vld [vmem:[%s6 + $0x30] sm:$0xff]
        %v2585 = vld [vmem:[%s6 + $0x38] sm:$0xff]
        %v2586 = vld [vmem:[%s6 + $0x40] sm:$0xff]
        %v2587 = vld [vmem:[%s6 + $0x48] sm:$0xff]
        %v2588 = vld [vmem:[%s6 + $0x50] sm:$0xff]
        %v2589 = vld [vmem:[%s6 + $0x58] sm:$0xff]
        %v2590 = vld [vmem:[%s6 + $0x60] sm:$0xff]
        %v2591 = vld [vmem:[%s6 + $0x68] sm:$0xff]
        %v2592 = vld [vmem:[%s6 + $0x70] sm:$0xff]
        %v2593 = vld [vmem:[%s6 + $0x78] sm:$0xff]
        %2595 = vset.pattern.permute.xlu0 0
        %2596 = vperm.xlu0 %2595, %v2578
        %v2597 = vpop.permute.xlu0 %2596
        %2600 = vset.pattern.permute.xlu0 0
        %2601 = vperm.xlu0 %2600, %v2579
        %v2602 = vpop.permute.xlu0 %2601
        %2605 = vset.pattern.permute.xlu0 0
        %2606 = vperm.xlu0 %2605, %v2580
        %v2607 = vpop.permute.xlu0 %2606
        %2610 = vset.pattern.permute.xlu0 0
        %2611 = vperm.xlu0 %2610, %v2581
        %v2612 = vpop.permute.xlu0 %2611
        %2615 = vset.pattern.permute.xlu0 0
        %2616 = vperm.xlu0 %2615, %v2582
        %v2617 = vpop.permute.xlu0 %2616
        %2620 = vset.pattern.permute.xlu0 0
        %2621 = vperm.xlu0 %2620, %v2583
        %v2622 = vpop.permute.xlu0 %2621
        %2625 = vset.pattern.permute.xlu0 0
        %2626 = vperm.xlu0 %2625, %v2584
        %v2627 = vpop.permute.xlu0 %2626
        %2630 = vset.pattern.permute.xlu0 0
        %2631 = vperm.xlu0 %2630, %v2585
        %v2632 = vpop.permute.xlu0 %2631
        %2635 = vset.pattern.permute.xlu0 0
        %2636 = vperm.xlu0 %2635, %v2586
        %v2637 = vpop.permute.xlu0 %2636
        %2640 = vset.pattern.permute.xlu0 0
        %2641 = vperm.xlu0 %2640, %v2587
        %v2642 = vpop.permute.xlu0 %2641
        %2645 = vset.pattern.permute.xlu0 0
        %2646 = vperm.xlu0 %2645, %v2588
        %v2647 = vpop.permute.xlu0 %2646
        %2650 = vset.pattern.permute.xlu0 0
        %2651 = vperm.xlu0 %2650, %v2589
        %v2652 = vpop.permute.xlu0 %2651
        %2655 = vset.pattern.permute.xlu0 0
        %2656 = vperm.xlu0 %2655, %v2590
        %v2657 = vpop.permute.xlu0 %2656
        %2660 = vset.pattern.permute.xlu0 0
        %2661 = vperm.xlu0 %2660, %v2591
        %v2662 = vpop.permute.xlu0 %2661
        %2665 = vset.pattern.permute.xlu0 0
        %2666 = vperm.xlu0 %2665, %v2592
        %v2667 = vpop.permute.xlu0 %2666
        %2670 = vset.pattern.permute.xlu0 0
        %2671 = vperm.xlu0 %2670, %v2593
        %v2672 = vpop.permute.xlu0 %2671
        %v2674 = vadd.f32 %v2546, %v2597
        %v2675 = vadd.f32 %v2547, %v2597
        %v2676 = vadd.f32 %v2548, %v2602
        %v2677 = vadd.f32 %v2549, %v2602
        %v2678 = vadd.f32 %v2550, %v2607
        %v2679 = vadd.f32 %v2551, %v2607
        %v2680 = vadd.f32 %v2552, %v2612
        %v2681 = vadd.f32 %v2553, %v2612
        %v2682 = vadd.f32 %v2554, %v2617
        %v2683 = vadd.f32 %v2555, %v2617
        %v2684 = vadd.f32 %v2556, %v2622
        %v2685 = vadd.f32 %v2557, %v2622
        %v2686 = vadd.f32 %v2558, %v2627
        %v2687 = vadd.f32 %v2559, %v2627
        %v2688 = vadd.f32 %v2560, %v2632
        %v2689 = vadd.f32 %v2561, %v2632
        %v2690 = vadd.f32 %v2562, %v2637
        %v2691 = vadd.f32 %v2563, %v2637
        %v2692 = vadd.f32 %v2564, %v2642
        %v2693 = vadd.f32 %v2565, %v2642
        %v2694 = vadd.f32 %v2566, %v2647
        %v2695 = vadd.f32 %v2567, %v2647
        %v2696 = vadd.f32 %v2568, %v2652
        %v2697 = vadd.f32 %v2569, %v2652
        %v2698 = vadd.f32 %v2570, %v2657
        %v2699 = vadd.f32 %v2571, %v2657
        %v2700 = vadd.f32 %v2572, %v2662
        %v2701 = vadd.f32 %v2573, %v2662
        %v2702 = vadd.f32 %v2574, %v2667
        %v2703 = vadd.f32 %v2575, %v2667
        %v2704 = vadd.f32 %v2576, %v2672
        %v2705 = vadd.f32 %v2577, %v2672
        %v2706 = vmax.f32 %v2674, 0.0
        %v2707 = vmax.f32 %v2675, 0.0
        %v2708 = vmax.f32 %v2676, 0.0
        %v2709 = vmax.f32 %v2677, 0.0
        %v2710 = vmax.f32 %v2678, 0.0
        %v2711 = vmax.f32 %v2679, 0.0
        %v2712 = vmax.f32 %v2680, 0.0
        %v2713 = vmax.f32 %v2681, 0.0
        %v2714 = vmax.f32 %v2682, 0.0
        %v2715 = vmax.f32 %v2683, 0.0
        %v2716 = vmax.f32 %v2684, 0.0
        %v2717 = vmax.f32 %v2685, 0.0
        %v2718 = vmax.f32 %v2686, 0.0
        %v2719 = vmax.f32 %v2687, 0.0
        %v2720 = vmax.f32 %v2688, 0.0
        %v2721 = vmax.f32 %v2689, 0.0
        %v2722 = vmax.f32 %v2690, 0.0
        %v2723 = vmax.f32 %v2691, 0.0
        %v2724 = vmax.f32 %v2692, 0.0
        %v2725 = vmax.f32 %v2693, 0.0
        %v2726 = vmax.f32 %v2694, 0.0
        %v2727 = vmax.f32 %v2695, 0.0
        %v2728 = vmax.f32 %v2696, 0.0
        %v2729 = vmax.f32 %v2697, 0.0
        %v2730 = vmax.f32 %v2698, 0.0
        %v2731 = vmax.f32 %v2699, 0.0
        %v2732 = vmax.f32 %v2700, 0.0
        %v2733 = vmax.f32 %v2701, 0.0
        %v2734 = vmax.f32 %v2702, 0.0
        %v2735 = vmax.f32 %v2703, 0.0
        %v2736 = vmax.f32 %v2704, 0.0
        %v2737 = vmax.f32 %v2705, 0.0
        %v2738 = vld [vmem:[%s7] sm:$0xf]
        %v2739 = vld [vmem:[%s7 + $0x4] sm:$0xf]
        %v2740 = vld [vmem:[%s7 + $0x8] sm:$0xf]
        %v2741 = vld [vmem:[%s7 + $0xc] sm:$0xf]
        %v2742 = vpack.c.bf16 %v2708, %v2706
        %v2743 = vpack.c.bf16 %v2709, %v2707
        %v2744 = vpack.c.bf16 %v2712, %v2710
        %v2745 = vpack.c.bf16 %v2713, %v2711
        %v2746 = vpack.c.bf16 %v2716, %v2714
        %v2747 = vpack.c.bf16 %v2717, %v2715
        %v2748 = vpack.c.bf16 %v2720, %v2718
        %v2749 = vpack.c.bf16 %v2721, %v2719
        %v2750 = vpack.c.bf16 %v2724, %v2722
        %v2751 = vpack.c.bf16 %v2725, %v2723
        %v2752 = vpack.c.bf16 %v2728, %v2726
        %v2753 = vpack.c.bf16 %v2729, %v2727
        %v2754 = vpack.c.bf16 %v2732, %v2730
        %v2755 = vpack.c.bf16 %v2733, %v2731
        %v2756 = vpack.c.bf16 %v2736, %v2734
        %v2757 = vpack.c.bf16 %v2737, %v2735
        %v2758 = vld [vmem:[%s8] sm:$0xff]
        %v2759 = vld [vmem:[%s8 + $0x8] sm:$0xff]
        %v2760 = vld [vmem:[%s8 + $0x10] sm:$0xff]
        %v2761 = vld [vmem:[%s8 + $0x18] sm:$0xff]
        %2763 = vset.pattern.permute.xlu0 0
        %2764 = vperm.xlu0 %2763, %v2758
        %v2765 = vpop.permute.xlu0 %2764
        %2768 = vset.pattern.permute.xlu0 0
        %2769 = vperm.xlu0 %2768, %v2759
        %v2770 = vpop.permute.xlu0 %2769
        %2773 = vset.pattern.permute.xlu0 0
        %2774 = vperm.xlu0 %2773, %v2760
        %v2775 = vpop.permute.xlu0 %2774
        %2778 = vset.pattern.permute.xlu0 0
        %2779 = vperm.xlu0 %2778, %v2761
        %v2780 = vpop.permute.xlu0 %2779
        %v2786 = vunpack.c.l.b16 %v2738
        %v2787 = vunpack.c.l.b16 %v2739
        %v2788 = vunpack.c.l.b16 %v2740
        %v2789 = vunpack.c.l.b16 %v2741
        %v2790 = vpack.c.b16 %v2787, %v2786
        %v2791 = vpack.c.b16 %v2789, %v2788
        %2794 = vmatprep.subr.bf16.mxu0 %v2743
        %2795 = vmatpush1.bf16.msra.mxu0 %v2742
        %2796 = vmatprep.subr.bf16.mxu0 %v2745
        %2797 = vmatpush1.bf16.msra.mxu0 %v2744
        %2798 = vmatprep.subr.bf16.mxu0 %v2747
        %2799 = vmatpush1.bf16.msra.mxu0 %v2746
        %2800 = vmatprep.subr.bf16.mxu0 %v2749
        %2801 = vmatpush1.bf16.msra.mxu0 %v2748
        %2802 = vmatprep.subr.bf16.mxu0 %v2751
        %2803 = vmatpush1.bf16.msra.mxu0 %v2750
        %2804 = vmatprep.subr.bf16.mxu0 %v2753
        %2805 = vmatpush1.bf16.msra.mxu0 %v2752
        %2806 = vmatprep.subr.bf16.mxu0 %v2755
        %2807 = vmatpush1.bf16.msra.mxu0 %v2754
        %2808 = vmatprep.subr.bf16.mxu0 %v2757
        %2809 = vmatpush1.bf16.msra.mxu0 %v2756
        %2810 = vmatprep.subr.bf16.mxu0 0
        %2811 = vmatpush1.bf16.msra.mxu0 0
        %2812 = vmatprep.subr.bf16.mxu0 0
        %2813 = vmatpush1.bf16.msra.mxu0 0
        %2814 = vmatprep.subr.bf16.mxu0 0
        %2815 = vmatpush1.bf16.msra.mxu0 0
        %2816 = vmatprep.subr.bf16.mxu0 0
        %2817 = vmatpush1.bf16.msra.mxu0 0
        %2818 = vmatprep.subr.bf16.mxu0 0
        %2819 = vmatpush1.bf16.msra.mxu0 0
        %2820 = vmatprep.subr.bf16.mxu0 0
        %2821 = vmatpush1.bf16.msra.mxu0 0
        %2822 = vmatprep.subr.bf16.mxu0 0
        %2823 = vmatpush1.bf16.msra.mxu0 0
        %2824 = vmatprep.subr.bf16.mxu0 0
        %2825 = vmatpush1.bf16.msra.mxu0 0
        %2826 = vmatprep.mubr.bf16.mxu0 0
        %2827 = vmatmul.mubr.bf16.gmra.mrb[0].mxu0 %v2790
        %v2828 = vpop.f32.mrb[0].mxu0
        %v2829 = vadd.f32 %v2765, %v2828
        %v2830 = vpop.f32.mrb[0].mxu0
        %v2831 = vadd.f32 %v2765, %v2830
        %v2832 = vpop.f32.mrb[0].mxu0
        %v2833 = vadd.f32 %v2770, %v2832
        %v2834 = vpop.f32.mrb[0].mxu0
        %v2835 = vadd.f32 %v2770, %v2834
        %2836 = vmatprep.mubr.bf16.mxu0 0
        %2837 = vmatmul.mubr.bf16.gmra.mrb[0].mxu0 %v2791
        %v2838 = vpop.f32.mrb[0].mxu0
        %v2839 = vadd.f32 %v2775, %v2838
        %v2840 = vpop.f32.mrb[0].mxu0
        %v2841 = vadd.f32 %v2775, %v2840
        %v2842 = vpop.f32.mrb[0].mxu0
        %v2843 = vadd.f32 %v2780, %v2842
        %v2844 = vpop.f32.mrb[0].mxu0
        %v2845 = vadd.f32 %v2780, %v2844
        %2846 = vdwg.mxu0
        %v2847 = vadd.f32 %v2829, %v332
        %v2848 = vadd.f32 %v2831, %v333
        %v2849 = vadd.f32 %v2833, %v334
        %v2850 = vadd.f32 %v2835, %v335
        %v2851 = vadd.f32 %v2839, %v336
        %v2852 = vadd.f32 %v2841, %v337
        %v2853 = vadd.f32 %v2843, %v338
        %v2854 = vadd.f32 %v2845, %v339
        %2855 = vst [vmem:[%s325] sm:$0xff] %v2847
        %2856 = vst [vmem:[%s325 + $0x8] sm:$0xff] %v2848
        %2857 = vst [vmem:[%s325 + $0x10] sm:$0xff] %v2849
        %2858 = vst [vmem:[%s325 + $0x18] sm:$0xff] %v2850
        %2859 = vst [vmem:[%s325 + $0x20] sm:$0xff] %v2851
        %2860 = vst [vmem:[%s325 + $0x28] sm:$0xff] %v2852
        %2861 = vst [vmem:[%s325 + $0x30] sm:$0xff] %v2853
        %2862 = vst [vmem:[%s325 + $0x38] sm:$0xff] %v2854
        %s2863 = sand.u32 %s225, 1
        %s2864 = scalar_lea.sflag [#allocation3], %s2863
        %s2865 = sand.u32 %s225, 1
        %s2866 = smul.addr %s2865, 64
        %s2867 = scalar_lea.vmem [#allocation2], %s2866
        // Predicated region
        $region57: #{tpu_custom_call.1} parent=55 // pred_check
          %p2868 = pneg %p235
        $region58: #{tpu_custom_call.1} parent=55 // pred_check_branch
          %2870 = sbr.rel (%p2868) target = $region60
        $region59: #{tpu_custom_call.1} parent=55 // pred_region
          %s2872 = ssub.s32 1024, 1024
          %2873 = vsyncadd %s2864, %s2872
          %s2874 = smul.addr %s23, 8
          %s2875 = smul.addr %s2874, 128
          %s2876 = scalar_lea.hbm %s9, %s2875
          %s2877 = sshll.u32 %s2867, 4
          %s2878 = int_to_ptr.vmem [resolvable:$true] %s2877
          %2883 = dma.vmem_to_hbm [thread:$0]  %s2878, 1024, %s2876, %s2864, 256, 256, 16
        $region60: #{tpu_custom_call.1} parent=55 // pred_fallthru
          _
      $region56: #{tpu_custom_call.1} parent=5 // pred_fallthru
        _
      %p2884 = scmp.le.s32.totalorder 2, %s18
      // Predicated region
      $region61: #{tpu_custom_call.1} parent=5 // pred_check
        %p2885 = pneg %p2884
      $region62: #{tpu_custom_call.1} parent=5 // pred_check_branch
        %2887 = sbr.rel (%p2885) target = $region64
      $region63: #{tpu_custom_call.1} parent=5 // pred_region
        %s2888 = ssub.s32 %s18, 2
        // Predicated region
        $region65: #{tpu_custom_call.1} parent=63 // pred_check
          %p2889 = pneg %p241
        $region66: #{tpu_custom_call.1} parent=63 // pred_check_branch
          %2891 = sbr.rel (%p2889) target = $region68
        $region67: #{tpu_custom_call.1} parent=63 // pred_region
          %s2892 = sand.u32 %s226, 1
          %s2893 = scalar_lea.sflag [#allocation3], %s2892
          %s2894 = sand.u32 %s226, 1
          %s2895 = smul.addr %s2894, 64
          %s2896 = scalar_lea.vmem [#allocation2], %s2895
          %2897 = dma.done %s2893, 1024
        $region68: #{tpu_custom_call.1} parent=63 // pred_fallthru
          _
      $region64: #{tpu_custom_call.1} parent=5 // pred_fallthru
        _
    $region6: #{tpu_custom_call.1} parent=1 // loop_footer
      %s22 = sadd.s32 1, %s18
    $region7: #{tpu_custom_call.1} parent=1 // loop_footer_branch
      %17 = sbr.rel target = $region3
    $region8: #{tpu_custom_call.1} parent=1 // loop_exit
      _
    %2898 = vsyncpa [#allocation3], 1
    %s2899 = scalar_lea.sflag [#allocation3], 1
    %2900 = vsyncpa %s2899, 1

</llo_original>
